<compile_context>
chip_gen: v5e
topology: v5e:2x2
jax: 0.10.0
libtpu: 0.0.40
codegen_flags: <defaults>
</compile_context>

<pallas_src>
import functools

import jax
import jax.numpy as jnp
from jax.experimental import pallas as pl
from jax.experimental.pallas import tpu as pltpu


def _round_up(v, m):
    return ((v + m - 1) // m) * m


def _pad2d(x, rows, cols):
    r, c = x.shape
    return jnp.zeros((rows, cols), x.dtype).at[:r, :c].set(x)


# ---------------------------------------------------------------------------
# Fused kernel: grid = (num_layers,).  One grid step == one GIN layer.
# ---------------------------------------------------------------------------

def _gin_fused_kernel(a_ref, x0_ref, p_ref,
                      w1_ref, b1_ref, w2_ref, b2_ref,
                      wf1_ref, bf1_ref, wf2_ref, bf2_ref,
                      out_ref, h_ref, fin_ref, *, eps):
    l = pl.program_id(0)
    last = pl.num_programs(0) - 1

    # Step 0: load node features into the resident VMEM scratch, pool them, and start
    # the final-MLP accumulator with readout_0 @ Wf1_chunk[0].
    @pl.when(l == 0)
    def _init():
        x0 = x0_ref[...]
        h_ref[...] = x0
        r0 = jnp.dot(p_ref[...], x0, preferred_element_type=jnp.float32)
        fin_ref[...] = jnp.dot(r0, wf1_ref[0], preferred_element_type=jnp.float32)

    # GIN layer l:  h <- MLP_l((1 + eps) * h + A @ h)
    h = h_ref[...]
    agg = jnp.dot(a_ref[...], h.astype(jnp.bfloat16),          # bf16 MXU, f32 accumulate
                  preferred_element_type=jnp.float32)
    z = h + agg if eps == 0.0 else (1.0 + eps) * h + agg
    h1 = jnp.dot(z, w1_ref[...], preferred_element_type=jnp.float32) + b1_ref[...]
    h1 = jnp.maximum(h1, 0.0)                                   # ReLU (VPU)
    h_new = jnp.dot(h1, w2_ref[...], preferred_element_type=jnp.float32) + b2_ref[...]
    h_ref[...] = h_new                                          # stays in VMEM, never HBM

    # Fused readout: readout_{l+1} = P @ h, folded straight into finalMLP's first Linear.
    r = jnp.dot(p_ref[...], h_new, preferred_element_type=jnp.float32)
    fin_ref[...] += jnp.dot(r, wf1_ref[l + 1], preferred_element_type=jnp.float32)

    # Last step: finish the final MLP (bias + ReLU + second Linear) and store output.
    @pl.when(l == last)
    def _final():
        hf = jnp.maximum(fin_ref[...] + bf1_ref[...], 0.0)
        out_ref[...] = (jnp.dot(hf, wf2_ref[...], preferred_element_type=jnp.float32)
                        + bf2_ref[...]).astype(out_ref.dtype)


# ---------------------------------------------------------------------------
# Parameters (PyTorch nn.Linear-style init, weights stored as (in, out)).
# ---------------------------------------------------------------------------

def init_params(key, num_layers, num_node_features, interm_hidden_dim,
                hidden_dim, out_interm_dim, out_dim):
    def linear(k, fan_in, fan_out):
        kw, kb = jax.random.split(k)
        bound = 1.0 / jnp.sqrt(float(fan_in))
        w = jax.random.uniform(kw, (fan_in, fan_out), jnp.float32, -bound, bound)
        b = jax.random.uniform(kb, (1, fan_out), jnp.float32, -bound, bound)
        return w, b

    keys = jax.random.split(key, 2 * num_layers + 2)
    layers = []
    in_dim = num_node_features
    for i in range(num_layers):
        w1, b1 = linear(keys[2 * i], in_dim, interm_hidden_dim)
        w2, b2 = linear(keys[2 * i + 1], interm_hidden_dim, hidden_dim)
        layers.append((w1, b1, w2, b2))
        in_dim = hidden_dim
    fin_in = num_node_features + num_layers * hidden_dim
    fw1, fb1 = linear(keys[-2], fin_in, out_interm_dim)
    fw2, fb2 = linear(keys[-1], out_interm_dim, out_dim)
    return {"layers": layers, "final": (fw1, fb1, fw2, fb2)}


# ---------------------------------------------------------------------------
# Forward: pad / pack operands, single fused pallas_call.
# ---------------------------------------------------------------------------

def gin_encoder_forward(params, x, edge_index, batch, num_graphs, eps=0.0):
    """x: (N, F) float32, edge_index: (2, E) int32 [src; dst], batch: (N,) int32."""
    n, f_in = x.shape
    layers = params["layers"]
    num_layers = len(layers)
    interm = layers[0][0].shape[1]
    hidden = layers[0][2].shape[1]
    fw1, fb1, fw2, fb2 = params["final"]
    out_interm = fw1.shape[1]
    out_dim = fw2.shape[1]

    # Padded sizes: feature dims to 128 lanes, nodes to 128, graphs to 8 sublanes.
    d = _round_up(max(f_in, hidden), 128)       # node-feature / hidden width
    hh = _round_up(interm, 128)                 # GIN-MLP intermediate width
    oi = _round_up(out_interm, 128)
    od = _round_up(out_dim, 128)
    n_pad = _round_up(max(n, 8), 128)
    g_pad = _round_up(max(num_graphs, 8), 8)

    # Dense aggregation A[dst, src] += 1 (bf16: small integer counts are exact).
    src, dst = edge_index[0], edge_index[1]
    a = (jnp.zeros((n_pad, n_pad), jnp.float32)
         .at[dst, src].add(1.0)).astype(jnp.bfloat16)
    # Pooling P[g, node]; padded nodes / graphs get all-zero rows / columns.
    batch_pad = jnp.full((n_pad,), -1, jnp.int32).at[:n].set(batch.astype(jnp.int32))
    p = (batch_pad[None, :] ==
         jnp.arange(g_pad, dtype=jnp.int32)[:, None]).astype(jnp.float32)

    x0 = _pad2d(x.astype(jnp.float32), n_pad, d)

    # Per-layer MLP weights, zero-padded to a common (d, hh)/(hh, d) shape and stacked.
    w1s = jnp.stack([_pad2d(w1, d, hh) for (w1, _, _, _) in layers])
    b1s = jnp.stack([_pad2d(b1, 1, hh) for (_, b1, _, _) in layers])
    w2s = jnp.stack([_pad2d(w2, hh, d) for (_, _, w2, _) in layers])
    b2s = jnp.stack([_pad2d(b2, 1, d) for (_, _, _, b2) in layers])

    # Final Linear-1 split into per-readout chunks so concat(readouts) @ Wf1 becomes
    # sum_j readout_j @ Wf1_chunk[j] (no concat, lane-padded rows are zero).
    chunks = [fw1[:f_in]]
    off = f_in
    for _ in range(num_layers):
        chunks.append(fw1[off:off + hidden])
        off += hidden
    wf1 = jnp.stack([_pad2d(c, d, oi) for c in chunks])          # (L+1, d, oi)
    bf1_p = _pad2d(fb1, 1, oi)
    wf2_p = _pad2d(fw2, oi, od)
    bf2_p = _pad2d(fb2, 1, od)

    operands = (a, x0, p, w1s, b1s, w2s, b2s, wf1, bf1_p, wf2_p, bf2_p)
    total_bytes = sum(int(o.size) * o.dtype.itemsize for o in operands) + g_pad * od * 4

    flops = 2 * num_layers * (n_pad * n_pad * d       # A @ h
                              + 2 * n_pad * d * hh    # layer MLP
                              + g_pad * n_pad * d     # pooling
                              + g_pad * d * oi)       # readout @ Wf1 chunk
    flops += 2 * (g_pad * n_pad * d + g_pad * d * oi + g_pad * oi * od)

    grid_spec = pltpu.PrefetchScalarGridSpec(
        num_scalar_prefetch=0,
        grid=(num_layers,),
        in_specs=[
            pl.BlockSpec((n_pad, n_pad), lambda l: (0, 0)),            # A  (VMEM-resident)
            pl.BlockSpec((n_pad, d), lambda l: (0, 0)),                # x0 (VMEM-resident)
            pl.BlockSpec((g_pad, n_pad), lambda l: (0, 0)),            # P  (VMEM-resident)
            pl.BlockSpec((None, d, hh), lambda l: (l, 0, 0)),          # W1[l] streamed
            pl.BlockSpec((None, 1, hh), lambda l: (l, 0, 0)),          # b1[l]
            pl.BlockSpec((None, hh, d), lambda l: (l, 0, 0)),          # W2[l]
            pl.BlockSpec((None, 1, d), lambda l: (l, 0, 0)),           # b2[l]
            pl.BlockSpec((num_layers + 1, d, oi), lambda l: (0, 0, 0)),  # Wf1 chunks resident
            pl.BlockSpec((1, oi), lambda l: (0, 0)),                   # bf1
            pl.BlockSpec((oi, od), lambda l: (0, 0)),                  # Wf2
            pl.BlockSpec((1, od), lambda l: (0, 0)),                   # bf2
        ],
        out_specs=pl.BlockSpec((g_pad, od), lambda l: (0, 0)),
        scratch_shapes=[
            pltpu.VMEM((n_pad, d), jnp.float32),     # resident node features h
            pltpu.VMEM((g_pad, oi), jnp.float32),    # final-MLP first-Linear accumulator
        ],
    )

    out_padded = pl.pallas_call(
        functools.partial(_gin_fused_kernel, eps=eps),
        grid_spec=grid_spec,
        out_shape=jax.ShapeDtypeStruct((g_pad, od), jnp.float32),
        compiler_params=pltpu.CompilerParams(
            dimension_semantics=("arbitrary",),      # layers are a sequential chain
            vmem_limit_bytes=int(max(8 * 1024 * 1024, 4 * total_bytes)),
        ),
        cost_estimate=pl.CostEstimate(flops=int(flops), transcendentals=0,
                                      bytes_accessed=int(total_bytes)),
    )(*operands)

    return out_padded[:num_graphs, :out_dim]


# ---------------------------------------------------------------------------
# Pure-JAX reference (f32, dense) for a sanity check.
# ---------------------------------------------------------------------------

def _reference_forward(params, x, edge_index, batch, num_graphs):
    n = x.shape[0]
    src, dst = edge_index[0], edge_index[1]
    a = jnp.zeros((n, n), jnp.float32).at[dst, src].add(1.0)
    p = (batch[None, :] == jnp.arange(num_graphs)[:, None]).astype(jnp.float32)
    readouts = [p @ x]
    h = x
    for (w1, b1, w2, b2) in params["layers"]:
        h = jnp.maximum((h + a @ h) @ w1 + b1, 0.0) @ w2 + b2
        readouts.append(p @ h)
    r = jnp.concatenate(readouts, axis=-1)
    fw1, fb1, fw2, fb2 = params["final"]
    return jnp.maximum(r @ fw1 + fb1, 0.0) @ fw2 + fb2


if __name__ == "__main__":
    num_layers = 3
    num_node_features = 16
    interm_hidden_dim = 32
    hidden_dim = 32
    out_interm_dim = 32
    out_dim = 8

    num_nodes = 32
    num_edges = 64
    num_graphs = 2

    key = jax.random.PRNGKey(0)
    k_params, k_x, k_src, k_dst = jax.random.split(key, 4)

    params = init_params(k_params, num_layers, num_node_features,
                         interm_hidden_dim, hidden_dim, out_interm_dim, out_dim)

    x = jax.random.normal(k_x, (num_nodes, num_node_features), jnp.float32)
    src = jax.random.randint(k_src, (num_edges,), 0, num_nodes, jnp.int32)
    dst = jax.random.randint(k_dst, (num_edges,), 0, num_nodes, jnp.int32)
    edge_index = jnp.stack([src, dst], axis=0)
    # First half of nodes -> graph 0, second half -> graph 1.
    batch = (jnp.arange(num_nodes) >= num_nodes // 2).astype(jnp.int32)

    out = gin_encoder_forward(params, x, edge_index, batch, num_graphs)
    jax.block_until_ready(out)
    assert out.shape == (num_graphs, out_dim)

    # Loose sanity check vs. f32 reference (kernel runs the aggregation in bf16).
    ref = _reference_forward(params, x, edge_index, batch, num_graphs)
    assert jnp.allclose(out, ref, rtol=1e-1, atol=1e-1), (out, ref)

    print("KERNEL_OK")
</pallas_src>

<mosaic_0001>
module attributes {stable_mosaic.version = 11 : i64} {
  func.func @_gin_fused_kernel(%arg0: i32, %arg1: memref<128x128xbf16, #tpu.memory_space<vmem>>, %arg2: memref<128x128xf32, #tpu.memory_space<vmem>>, %arg3: memref<8x128xf32, #tpu.memory_space<vmem>>, %arg4: memref<1x128x128xf32, #tpu.memory_space<vmem>>, %arg5: memref<1x1x128xf32, #tpu.memory_space<vmem>>, %arg6: memref<1x128x128xf32, #tpu.memory_space<vmem>>, %arg7: memref<1x1x128xf32, #tpu.memory_space<vmem>>, %arg8: memref<4x128x128xf32, #tpu.memory_space<vmem>>, %arg9: memref<1x128xf32, #tpu.memory_space<vmem>>, %arg10: memref<128x128xf32, #tpu.memory_space<vmem>>, %arg11: memref<1x128xf32, #tpu.memory_space<vmem>>, %arg12: memref<8x128xf32, #tpu.memory_space<vmem>>, %arg13: memref<128x128xf32, #tpu.memory_space<vmem>>, %arg14: memref<8x128xf32, #tpu.memory_space<vmem>>) attributes {dimension_semantics = [#tpu.dimension_semantics<arbitrary>], iteration_bounds = array<i64: 3>, scalar_prefetch = 0 : i64, scratch_operands = 2 : i64, tpu.core_type = #tpu.core_type<tc>, window_params = [{pipeline_mode = #tpu.pipeline_mode<synchronous>, transform_indices = @transform_0, window_bounds = array<i64: 128, 128>}, {pipeline_mode = #tpu.pipeline_mode<synchronous>, transform_indices = @transform_1, window_bounds = array<i64: 128, 128>}, {pipeline_mode = #tpu.pipeline_mode<synchronous>, transform_indices = @transform_2, window_bounds = array<i64: 8, 128>}, {transform_indices = @transform_3, window_bounds = array<i64: 1, 128, 128>}, {transform_indices = @transform_4, window_bounds = array<i64: 1, 1, 128>}, {transform_indices = @transform_5, window_bounds = array<i64: 1, 128, 128>}, {transform_indices = @transform_6, window_bounds = array<i64: 1, 1, 128>}, {pipeline_mode = #tpu.pipeline_mode<synchronous>, transform_indices = @transform_7, window_bounds = array<i64: 4, 128, 128>}, {pipeline_mode = #tpu.pipeline_mode<synchronous>, transform_indices = @transform_8, window_bounds = array<i64: 1, 128>}, {pipeline_mode = #tpu.pipeline_mode<synchronous>, transform_indices = @transform_9, window_bounds = array<i64: 128, 128>}, {pipeline_mode = #tpu.pipeline_mode<synchronous>, transform_indices = @transform_10, window_bounds = array<i64: 1, 128>}, {pipeline_mode = #tpu.pipeline_mode<synchronous>, transform_indices = @transform_11, window_bounds = array<i64: 8, 128>}]} {
    %c0_i32 = arith.constant 0 : i32
    %0 = arith.cmpi eq, %arg0, %c0_i32 : i32
    %1 = arith.extui %0 : i1 to i32
    %c0_i32_0 = arith.constant 0 : i32
    %2 = arith.cmpi ne, %1, %c0_i32_0 : i32
    scf.if %2 {
      %c0_32 = arith.constant 0 : index
      %c0_33 = arith.constant 0 : index
      %38 = vector.load %arg2[%c0_32, %c0_33] : memref<128x128xf32, #tpu.memory_space<vmem>>, vector<128x128xf32>
      %c0_34 = arith.constant 0 : index
      %c0_35 = arith.constant 0 : index
      %39 = vector.load %arg13[%c0_34, %c0_35] : memref<128x128xf32, #tpu.memory_space<vmem>>, vector<128x128xf32>
      tpu.vector_store %arg13[%c0_34, %c0_35], %38 {strides = array<i32>} : memref<128x128xf32, #tpu.memory_space<vmem>>, vector<128x128xf32>,
      %c0_36 = arith.constant 0 : index
      %c0_37 = arith.constant 0 : index
      %40 = vector.load %arg3[%c0_36, %c0_37] : memref<8x128xf32, #tpu.memory_space<vmem>>, vector<8x128xf32>
      %cst_38 = arith.constant dense<0.000000e+00> : vector<8x128xf32>
      %41 = tpu.matmul %40, %38, %cst_38 {dimension_numbers = #tpu.dot_dimension_numbers<[1], [0], [0], [1], [0, 0, 1, 1], [], []>} : vector<8x128xf32>, vector<128x128xf32>, vector<8x128xf32> -> vector<8x128xf32>
      %c0_39 = arith.constant 0 : index
      %c0_40 = arith.constant 0 : index
      %c0_41 = arith.constant 0 : index
      %42 = vector.load %arg8[%c0_39, %c0_40, %c0_41] : memref<4x128x128xf32, #tpu.memory_space<vmem>>, vector<1x128x128xf32>
      %43 = vector.shape_cast %42 : vector<1x128x128xf32> to vector<128x128xf32>
      %cst_42 = arith.constant dense<0.000000e+00> : vector<8x128xf32>
      %44 = tpu.matmul %41, %43, %cst_42 {dimension_numbers = #tpu.dot_dimension_numbers<[1], [0], [0], [1], [0, 0, 1, 1], [], []>} : vector<8x128xf32>, vector<128x128xf32>, vector<8x128xf32> -> vector<8x128xf32>
      %c0_43 = arith.constant 0 : index
      %c0_44 = arith.constant 0 : index
      %45 = vector.load %arg14[%c0_43, %c0_44] : memref<8x128xf32, #tpu.memory_space<vmem>>, vector<8x128xf32>
      tpu.vector_store %arg14[%c0_43, %c0_44], %44 {strides = array<i32>} : memref<8x128xf32, #tpu.memory_space<vmem>>, vector<8x128xf32>,
    } else {
    }
    %c0 = arith.constant 0 : index
    %c0_1 = arith.constant 0 : index
    %3 = vector.load %arg13[%c0, %c0_1] : memref<128x128xf32, #tpu.memory_space<vmem>>, vector<128x128xf32>
    %c0_2 = arith.constant 0 : index
    %c0_3 = arith.constant 0 : index
    %4 = vector.load %arg1[%c0_2, %c0_3] : memref<128x128xbf16, #tpu.memory_space<vmem>>, vector<128x128xbf16>
    %5 = arith.truncf %3 : vector<128x128xf32> to vector<128x128xbf16>
    %cst = arith.constant dense<0.000000e+00> : vector<128x128xf32>
    %6 = tpu.matmul %4, %5, %cst {dimension_numbers = #tpu.dot_dimension_numbers<[1], [0], [0], [1], [0, 0, 1, 1], [], []>} : vector<128x128xbf16>, vector<128x128xbf16>, vector<128x128xf32> -> vector<128x128xf32>
    %7 = arith.addf %3, %6 : vector<128x128xf32>
    %c0_4 = arith.constant 0 : index
    %c0_5 = arith.constant 0 : index
    %c0_6 = arith.constant 0 : index
    %8 = vector.load %arg4[%c0_4, %c0_5, %c0_6] : memref<1x128x128xf32, #tpu.memory_space<vmem>>, vector<1x128x128xf32>
    %9 = vector.shape_cast %8 : vector<1x128x128xf32> to vector<128x128xf32>
    %cst_7 = arith.constant dense<0.000000e+00> : vector<128x128xf32>
    %10 = tpu.matmul %7, %9, %cst_7 {dimension_numbers = #tpu.dot_dimension_numbers<[1], [0], [0], [1], [0, 0, 1, 1], [], []>} : vector<128x128xf32>, vector<128x128xf32>, vector<128x128xf32> -> vector<128x128xf32>
    %c0_8 = arith.constant 0 : index
    %c0_9 = arith.constant 0 : index
    %c0_10 = arith.constant 0 : index
    %11 = vector.load %arg5[%c0_8, %c0_9, %c0_10] : memref<1x1x128xf32, #tpu.memory_space<vmem>>, vector<1x1x128xf32>
    %12 = vector.shape_cast %11 : vector<1x1x128xf32> to vector<1x128xf32>
    %13 = vector.broadcast %12 : vector<1x128xf32> to vector<128x128xf32>
    %14 = arith.addf %10, %13 : vector<128x128xf32>
    %cst_11 = arith.constant 0.000000e+00 : f32
    %15 = vector.broadcast %cst_11 : f32 to vector<128x128xf32>
    %16 = arith.maximumf %14, %15 : vector<128x128xf32>
    %c0_12 = arith.constant 0 : index
    %c0_13 = arith.constant 0 : index
    %c0_14 = arith.constant 0 : index
    %17 = vector.load %arg6[%c0_12, %c0_13, %c0_14] : memref<1x128x128xf32, #tpu.memory_space<vmem>>, vector<1x128x128xf32>
    %18 = vector.shape_cast %17 : vector<1x128x128xf32> to vector<128x128xf32>
    %cst_15 = arith.constant dense<0.000000e+00> : vector<128x128xf32>
    %19 = tpu.matmul %16, %18, %cst_15 {dimension_numbers = #tpu.dot_dimension_numbers<[1], [0], [0], [1], [0, 0, 1, 1], [], []>} : vector<128x128xf32>, vector<128x128xf32>, vector<128x128xf32> -> vector<128x128xf32>
    %c0_16 = arith.constant 0 : index
    %c0_17 = arith.constant 0 : index
    %c0_18 = arith.constant 0 : index
    %20 = vector.load %arg7[%c0_16, %c0_17, %c0_18] : memref<1x1x128xf32, #tpu.memory_space<vmem>>, vector<1x1x128xf32>
    %21 = vector.shape_cast %20 : vector<1x1x128xf32> to vector<1x128xf32>
    %22 = vector.broadcast %21 : vector<1x128xf32> to vector<128x128xf32>
    %23 = arith.addf %19, %22 : vector<128x128xf32>
    %c0_19 = arith.constant 0 : index
    %c0_20 = arith.constant 0 : index
    %24 = vector.load %arg13[%c0_19, %c0_20] : memref<128x128xf32, #tpu.memory_space<vmem>>, vector<128x128xf32>
    tpu.vector_store %arg13[%c0_19, %c0_20], %23 {strides = array<i32>} : memref<128x128xf32, #tpu.memory_space<vmem>>, vector<128x128xf32>,
    %c0_21 = arith.constant 0 : index
    %c0_22 = arith.constant 0 : index
    %25 = vector.load %arg3[%c0_21, %c0_22] : memref<8x128xf32, #tpu.memory_space<vmem>>, vector<8x128xf32>
    %cst_23 = arith.constant dense<0.000000e+00> : vector<8x128xf32>
    %26 = tpu.matmul %25, %23, %cst_23 {dimension_numbers = #tpu.dot_dimension_numbers<[1], [0], [0], [1], [0, 0, 1, 1], [], []>} : vector<8x128xf32>, vector<128x128xf32>, vector<8x128xf32> -> vector<8x128xf32>
    %c0_24 = arith.constant 0 : index
    %c0_25 = arith.constant 0 : index
    %27 = vector.load %arg14[%c0_24, %c0_25] : memref<8x128xf32, #tpu.memory_space<vmem>>, vector<8x128xf32>
    %c1_i32 = arith.constant 1 : i32
    %28 = arith.addi %arg0, %c1_i32 : i32
    %29 = arith.index_cast %28 : i32 to index
    %c0_26 = arith.constant 0 : index
    %c0_27 = arith.constant 0 : index
    %30 = vector.load %arg8[%29, %c0_26, %c0_27] : memref<4x128x128xf32, #tpu.memory_space<vmem>>, vector<1x128x128xf32>
    %31 = vector.shape_cast %30 : vector<1x128x128xf32> to vector<128x128xf32>
    %cst_28 = arith.constant dense<0.000000e+00> : vector<8x128xf32>
    %32 = tpu.matmul %26, %31, %cst_28 {dimension_numbers = #tpu.dot_dimension_numbers<[1], [0], [0], [1], [0, 0, 1, 1], [], []>} : vector<8x128xf32>, vector<128x128xf32>, vector<8x128xf32> -> vector<8x128xf32>
    %33 = arith.addf %27, %32 : vector<8x128xf32>
    %c0_29 = arith.constant 0 : index
    %c0_30 = arith.constant 0 : index
    %34 = vector.load %arg14[%c0_29, %c0_30] : memref<8x128xf32, #tpu.memory_space<vmem>>, vector<8x128xf32>
    tpu.vector_store %arg14[%c0_29, %c0_30], %33 {strides = array<i32>} : memref<8x128xf32, #tpu.memory_space<vmem>>, vector<8x128xf32>,
    %c2_i32 = arith.constant 2 : i32
    %35 = arith.cmpi eq, %arg0, %c2_i32 : i32
    %36 = arith.extui %35 : i1 to i32
    %c0_i32_31 = arith.constant 0 : i32
    %37 = arith.cmpi ne, %36, %c0_i32_31 : i32
    scf.if %37 {
      %c0_32 = arith.constant 0 : index
      %c0_33 = arith.constant 0 : index
      %38 = vector.load %arg14[%c0_32, %c0_33] : memref<8x128xf32, #tpu.memory_space<vmem>>, vector<8x128xf32>
      %c0_34 = arith.constant 0 : index
      %c0_35 = arith.constant 0 : index
      %39 = vector.load %arg9[%c0_34, %c0_35] : memref<1x128xf32, #tpu.memory_space<vmem>>, vector<1x128xf32>
      %40 = vector.broadcast %39 : vector<1x128xf32> to vector<8x128xf32>
      %41 = arith.addf %38, %40 : vector<8x128xf32>
      %cst_36 = arith.constant 0.000000e+00 : f32
      %42 = vector.broadcast %cst_36 : f32 to vector<8x128xf32>
      %43 = arith.maximumf %41, %42 : vector<8x128xf32>
      %c0_37 = arith.constant 0 : index
      %c0_38 = arith.constant 0 : index
      %44 = vector.load %arg10[%c0_37, %c0_38] : memref<128x128xf32, #tpu.memory_space<vmem>>, vector<128x128xf32>
      %cst_39 = arith.constant dense<0.000000e+00> : vector<8x128xf32>
      %45 = tpu.matmul %43, %44, %cst_39 {dimension_numbers = #tpu.dot_dimension_numbers<[1], [0], [0], [1], [0, 0, 1, 1], [], []>} : vector<8x128xf32>, vector<128x128xf32>, vector<8x128xf32> -> vector<8x128xf32>
      %c0_40 = arith.constant 0 : index
      %c0_41 = arith.constant 0 : index
      %46 = vector.load %arg11[%c0_40, %c0_41] : memref<1x128xf32, #tpu.memory_space<vmem>>, vector<1x128xf32>
      %47 = vector.broadcast %46 : vector<1x128xf32> to vector<8x128xf32>
      %48 = arith.addf %45, %47 : vector<8x128xf32>
      %c0_42 = arith.constant 0 : index
      %c0_43 = arith.constant 0 : index
      %49 = vector.load %arg12[%c0_42, %c0_43] : memref<8x128xf32, #tpu.memory_space<vmem>>, vector<8x128xf32>
      tpu.vector_store %arg12[%c0_42, %c0_43], %48 {strides = array<i32>} : memref<8x128xf32, #tpu.memory_space<vmem>>, vector<8x128xf32>,
    } else {
    }
    return
  }
  func.func @transform_0(%arg0: i32) -> (i32, i32) {
    %c0_i32 = arith.constant 0 : i32
    %c0_i32_0 = arith.constant 0 : i32
    %c0_i32_1 = arith.constant 0 : i32
    return %c0_i32, %c0_i32_0 : i32, i32
  }
  func.func @transform_1(%arg0: i32) -> (i32, i32) {
    %c0_i32 = arith.constant 0 : i32
    %c0_i32_0 = arith.constant 0 : i32
    %c0_i32_1 = arith.constant 0 : i32
    return %c0_i32, %c0_i32_0 : i32, i32
  }
  func.func @transform_2(%arg0: i32) -> (i32, i32) {
    %c0_i32 = arith.constant 0 : i32
    %c0_i32_0 = arith.constant 0 : i32
    %c0_i32_1 = arith.constant 0 : i32
    return %c0_i32, %c0_i32_0 : i32, i32
  }
  func.func @transform_3(%arg0: i32) -> (i32, i32, i32) {
    %c0_i32 = arith.constant 0 : i32
    %c0_i32_0 = arith.constant 0 : i32
    %c0_i32_1 = arith.constant 0 : i32
    return %arg0, %c0_i32, %c0_i32_0 : i32, i32, i32
  }
  func.func @transform_4(%arg0: i32) -> (i32, i32, i32) {
    %c0_i32 = arith.constant 0 : i32
    %c0_i32_0 = arith.constant 0 : i32
    %c0_i32_1 = arith.constant 0 : i32
    return %arg0, %c0_i32, %c0_i32_0 : i32, i32, i32
  }
  func.func @transform_5(%arg0: i32) -> (i32, i32, i32) {
    %c0_i32 = arith.constant 0 : i32
    %c0_i32_0 = arith.constant 0 : i32
    %c0_i32_1 = arith.constant 0 : i32
    return %arg0, %c0_i32, %c0_i32_0 : i32, i32, i32
  }
  func.func @transform_6(%arg0: i32) -> (i32, i32, i32) {
    %c0_i32 = arith.constant 0 : i32
    %c0_i32_0 = arith.constant 0 : i32
    %c0_i32_1 = arith.constant 0 : i32
    return %arg0, %c0_i32, %c0_i32_0 : i32, i32, i32
  }
  func.func @transform_7(%arg0: i32) -> (i32, i32, i32) {
    %c0_i32 = arith.constant 0 : i32
    %c0_i32_0 = arith.constant 0 : i32
    %c0_i32_1 = arith.constant 0 : i32
    %c0_i32_2 = arith.constant 0 : i32
    return %c0_i32, %c0_i32_0, %c0_i32_1 : i32, i32, i32
  }
  func.func @transform_8(%arg0: i32) -> (i32, i32) {
    %c0_i32 = arith.constant 0 : i32
    %c0_i32_0 = arith.constant 0 : i32
    %c0_i32_1 = arith.constant 0 : i32
    return %c0_i32, %c0_i32_0 : i32, i32
  }
  func.func @transform_9(%arg0: i32) -> (i32, i32) {
    %c0_i32 = arith.constant 0 : i32
    %c0_i32_0 = arith.constant 0 : i32
    %c0_i32_1 = arith.constant 0 : i32
    return %c0_i32, %c0_i32_0 : i32, i32
  }
  func.func @transform_10(%arg0: i32) -> (i32, i32) {
    %c0_i32 = arith.constant 0 : i32
    %c0_i32_0 = arith.constant 0 : i32
    %c0_i32_1 = arith.constant 0 : i32
    return %c0_i32, %c0_i32_0 : i32, i32
  }
  func.func @transform_11(%arg0: i32) -> (i32, i32) {
    %c0_i32 = arith.constant 0 : i32
    %c0_i32_0 = arith.constant 0 : i32
    %c0_i32_1 = arith.constant 0 : i32
    return %c0_i32, %c0_i32_0 : i32, i32
  }
}

</mosaic_0001>

<llo_original>
// kernel: tpu_custom_call.1
$region0: #{tpu_custom_call.1}
  #allocation0 [shape = 'u32[]', space=smem, size = 0x4, offset = 0x4, fixed_abs, tag = 'smem constant byte address 0x4 - core index']
  #allocation1 [shape = 'u32[72,128]{1,0:T(1,128)}', space=vmem, size = 0x9000, scoped, tag = 'internal scratch']
  #allocation2 [shape = 'f32[128,128]{1,0:T(8,128)}', space=vmem, size = 0x10000, scoped, tag = 'scratch operand']
  #allocation3 [shape = 'f32[8,128]{1,0:T(8,128)}', space=vmem, size = 0x1000, scoped, tag = 'scratch operand']
  %s0 = inlined_call_operand.hbm [shape: bf16[128,128], index: 0, kind: input, shape index: {}]
  %s1 = inlined_call_operand.hbm [shape: f32[128,128], index: 1, kind: input, shape index: {}]
  %s2 = inlined_call_operand.hbm [shape: f32[8,128], index: 2, kind: input, shape index: {}]
  %s3 = inlined_call_operand.hbm [shape: f32[3,128,128], index: 3, kind: input, shape index: {}]
  %s4 = inlined_call_operand.vmem [shape: f32[3,1,128], index: 4, kind: input, shape index: {}]
  %s5 = inlined_call_operand.hbm [shape: f32[3,128,128], index: 5, kind: input, shape index: {}]
  %s6 = inlined_call_operand.hbm [shape: f32[3,1,128], index: 6, kind: input, shape index: {}]
  %s7 = inlined_call_operand.hbm [shape: f32[4,128,128], index: 7, kind: input, shape index: {}]
  %s8 = inlined_call_operand.vmem [shape: f32[1,128], index: 8, kind: input, shape index: {}]
  %s9 = inlined_call_operand.hbm [shape: f32[128,128], index: 9, kind: input, shape index: {}]
  %s10 = inlined_call_operand.vmem [shape: f32[1,128], index: 10, kind: input, shape index: {}]
  %s11 = inlined_call_operand.hbm [shape: f32[8,128], index: 11, kind: output, shape index: {}]
  %s12 = sld [smem:[#allocation0]]
  $region117: #{tpu_custom_call.1} parent=0
    _
  %s14 = ssub.s32 1, %s12
  %s15 = scalar_select 0, %s14, %s12
  $region1: #{tpu_custom_call.1} parent=0
    #allocation4 [shape = 'u8[32768]{0}', space=vmem, size = 0x8000, scoped, tag = 'input window, operand 0, single buffered']
    #allocation5 [shape = 's32[2]{0}', space=sflag, size = 0x8, scoped, tag = 'scoped memory for tpu_custom_call.1']
    #allocation6 [shape = 's32[2]{0}', space=sflag, size = 0x8, scoped, tag = 'scoped memory for tpu_custom_call.1']
    #allocation7 [shape = 'u8[65536]{0}', space=vmem, size = 0x10000, scoped, tag = 'input window, operand 1, single buffered']
    #allocation8 [shape = 's32[1]{0}', space=sflag, size = 0x4, scoped, tag = 'scoped memory for tpu_custom_call.1']
    #allocation9 [shape = 'u8[4096]{0}', space=vmem, size = 0x1000, scoped, tag = 'input window, operand 2, single buffered']
    #allocation10 [shape = 'u8[131072]{0}', space=vmem, size = 0x20000, scoped, tag = 'input window, operand 3']
    #allocation11 [shape = 's32[2]{0}', space=sflag, size = 0x8, scoped, tag = 'scoped memory for tpu_custom_call.1']
    #allocation12 [shape = 'u8[131072]{0}', space=vmem, size = 0x20000, scoped, tag = 'input window, operand 5']
    #allocation13 [shape = 'u8[1024]{0}', space=vmem, size = 0x400, scoped, tag = 'input window, operand 6']
    #allocation14 [shape = 's32[2]{0}', space=sflag, size = 0x8, scoped, tag = 'scoped memory for tpu_custom_call.1']
    #allocation15 [shape = 'u8[262144]{0}', space=vmem, size = 0x40000, scoped, tag = 'input window, operand 7, single buffered']
    #allocation16 [shape = 'u8[65536]{0}', space=vmem, size = 0x10000, scoped, tag = 'input window, operand 9, single buffered']
    #allocation17 [shape = 's32[1]{0}', space=sflag, size = 0x4, scoped, tag = 'scoped memory for tpu_custom_call.1']
    #allocation18 [shape = 'u8[4096]{0}', space=vmem, size = 0x1000, scoped, tag = 'output window, operand 0, single buffered']
    %16 = vsyncpa [#allocation5], 0
    %17 = vsyncpa [#allocation8], 0
    %18 = vsyncpa [#allocation11], 0
    %s19 = scalar_lea.sflag [#allocation11], 1
    %20 = vsyncpa %s19, 0
    %21 = vsyncpa [#allocation14], 0
    %s22 = scalar_lea.sflag [#allocation14], 1
    %23 = vsyncpa %s22, 0
    %24 = vsyncpa [#allocation17], 0
    %25 = vsyncpa [#allocation6], 0
    loop: start=0, step=1, limit=5
    $region2: #{tpu_custom_call.1} parent=1 // loop_pre_header
      _
    $region3: #{tpu_custom_call.1} parent=1 // loop_header
      %s27 = sphi 0, %s31
      %p28 = scmp.ge.s32.totalorder %s27, 5
      %s35 = sphi 0, %s35
      %s37 = sphi 0, %s35
      %s38 = sphi 0, %s37
      %s52 = sphi 0, %s38
      %s56 = sphi 0, %s56
      %s58 = sphi 0, %s56
      %s59 = sphi 0, %s58
      %s73 = sphi 0, %s59
      %s77 = sphi 0, %s77
      %s79 = sphi 0, %s77
      %s80 = sphi 0, %s79
      %s94 = sphi 0, %s80
      %s100 = sphi 0, %s102
      %s103 = sphi 0, %s100
      %s104 = sphi 0, %s103
      %s120 = sphi 0, %s104
      %s126 = sphi 0, %s128
      %s129 = sphi 0, %s126
      %s130 = sphi 0, %s129
      %s146 = sphi 0, %s130
      %s152 = sphi 0, %s154
      %s155 = sphi 0, %s152
      %s156 = sphi 0, %s155
      %s172 = sphi 0, %s156
      %s178 = sphi 0, %s180
      %s181 = sphi 0, %s178
      %s182 = sphi 0, %s181
      %s198 = sphi 0, %s182
      %s202 = sphi 0, %s202
      %s204 = sphi 0, %s202
      %s205 = sphi 0, %s204
      %s219 = sphi 0, %s205
      %s223 = sphi 0, %s223
      %s225 = sphi 0, %s223
      %s226 = sphi 0, %s225
      %s240 = sphi 0, %s226
      %s244 = sphi 0, %s244
      %s246 = sphi 0, %s244
      %s247 = sphi 0, %s246
      %s261 = sphi 0, %s247
      %s265 = sphi 0, %s265
      %s267 = sphi 0, %s265
      %s268 = sphi 0, %s267
      %s282 = sphi 0, %s268
      %s286 = sphi 0, %s286
      %s288 = sphi 0, %s286
      %s289 = sphi 0, %s288
      %s303 = sphi 0, %s289
    $region4: #{tpu_custom_call.1} parent=1 // loop_header_branch
      %30 = sbr.rel (%p28) target = $region8
    $region5: #{tpu_custom_call.1} parent=1 // loop_body
      %s32 = ssub.s32 %s27, 1
      %s33 = ssub.s32 %s27, 2
      %s34 = sadd.s32 %s27, 1
      %s36 = sadd.s32 %s35, 1
      %p39 = scmp.eq.s32.totalorder %s27, 2
      %p40 = scmp.ne.s32.totalorder %s35, %s37
      %p41 = scmp.eq.s32.totalorder %s27, 0
      %p42 = por %p40, %p41
      %p43 = scmp.ne.s32.totalorder %s35, %s37
      %p44 = scmp.eq.s32.totalorder %s32, 2
      %p45 = por %p43, %p44
      %p46 = scmp.ne.s32.totalorder %s37, %s38
      %p47 = scmp.eq.s32.totalorder %s32, 0
      %p48 = por %p46, %p47
      %p49 = scmp.ne.s32.totalorder %s37, %s38
      %p50 = scmp.eq.s32.totalorder %s33, 2
      %p51 = por %p49, %p50
      %p53 = scmp.ne.s32.totalorder %s38, %s52
      %p54 = scmp.eq.s32.totalorder %s33, 0
      %p55 = por %p53, %p54
      %s57 = sadd.s32 %s56, 1
      %p60 = scmp.eq.s32.totalorder %s27, 2
      %p61 = scmp.ne.s32.totalorder %s56, %s58
      %p62 = scmp.eq.s32.totalorder %s27, 0
      %p63 = por %p61, %p62
      %p64 = scmp.ne.s32.totalorder %s56, %s58
      %p65 = scmp.eq.s32.totalorder %s32, 2
      %p66 = por %p64, %p65
      %p67 = scmp.ne.s32.totalorder %s58, %s59
      %p68 = scmp.eq.s32.totalorder %s32, 0
      %p69 = por %p67, %p68
      %p70 = scmp.ne.s32.totalorder %s58, %s59
      %p71 = scmp.eq.s32.totalorder %s33, 2
      %p72 = por %p70, %p71
      %p74 = scmp.ne.s32.totalorder %s59, %s73
      %p75 = scmp.eq.s32.totalorder %s33, 0
      %p76 = por %p74, %p75
      %s78 = sadd.s32 %s77, 1
      %p81 = scmp.eq.s32.totalorder %s27, 2
      %p82 = scmp.ne.s32.totalorder %s77, %s79
      %p83 = scmp.eq.s32.totalorder %s27, 0
      %p84 = por %p82, %p83
      %p85 = scmp.ne.s32.totalorder %s77, %s79
      %p86 = scmp.eq.s32.totalorder %s32, 2
      %p87 = por %p85, %p86
      %p88 = scmp.ne.s32.totalorder %s79, %s80
      %p89 = scmp.eq.s32.totalorder %s32, 0
      %p90 = por %p88, %p89
      %p91 = scmp.ne.s32.totalorder %s79, %s80
      %p92 = scmp.eq.s32.totalorder %s33, 2
      %p93 = por %p91, %p92
      %p95 = scmp.ne.s32.totalorder %s80, %s94
      %p96 = scmp.eq.s32.totalorder %s33, 0
      %p97 = por %p95, %p96
      %s98 = ssub.s32 %s27, %s34
      %p99 = scmp.eq.s32.totalorder %s98, 0
      %s101 = sadd.s32 %s100, 1
      %s102 = scalar_select %p99, %s100, %s101
      %p105 = pneg %p99
      %p106 = scmp.eq.s32.totalorder %s27, 2
      %p107 = por %p105, %p106
      %p108 = scmp.ne.s32.totalorder %s100, %s103
      %p109 = scmp.eq.s32.totalorder %s27, 0
      %p110 = por %p108, %p109
      %p111 = scmp.ne.s32.totalorder %s100, %s103
      %p112 = scmp.eq.s32.totalorder %s32, 2
      %p113 = por %p111, %p112
      %p114 = scmp.ne.s32.totalorder %s103, %s104
      %p115 = scmp.eq.s32.totalorder %s32, 0
      %p116 = por %p114, %p115
      %p117 = scmp.ne.s32.totalorder %s103, %s104
      %p118 = scmp.eq.s32.totalorder %s33, 2
      %p119 = por %p117, %p118
      %p121 = scmp.ne.s32.totalorder %s104, %s120
      %p122 = scmp.eq.s32.totalorder %s33, 0
      %p123 = por %p121, %p122
      %s124 = ssub.s32 %s27, %s34
      %p125 = scmp.eq.s32.totalorder %s124, 0
      %s127 = sadd.s32 %s126, 1
      %s128 = scalar_select %p125, %s126, %s127
      %p131 = pneg %p125
      %p132 = scmp.eq.s32.totalorder %s27, 2
      %p133 = por %p131, %p132
      %p134 = scmp.ne.s32.totalorder %s126, %s129
      %p135 = scmp.eq.s32.totalorder %s27, 0
      %p136 = por %p134, %p135
      %p137 = scmp.ne.s32.totalorder %s126, %s129
      %p138 = scmp.eq.s32.totalorder %s32, 2
      %p139 = por %p137, %p138
      %p140 = scmp.ne.s32.totalorder %s129, %s130
      %p141 = scmp.eq.s32.totalorder %s32, 0
      %p142 = por %p140, %p141
      %p143 = scmp.ne.s32.totalorder %s129, %s130
      %p144 = scmp.eq.s32.totalorder %s33, 2
      %p145 = por %p143, %p144
      %p147 = scmp.ne.s32.totalorder %s130, %s146
      %p148 = scmp.eq.s32.totalorder %s33, 0
      %p149 = por %p147, %p148
      %s150 = ssub.s32 %s27, %s34
      %p151 = scmp.eq.s32.totalorder %s150, 0
      %s153 = sadd.s32 %s152, 1
      %s154 = scalar_select %p151, %s152, %s153
      %p157 = pneg %p151
      %p158 = scmp.eq.s32.totalorder %s27, 2
      %p159 = por %p157, %p158
      %p160 = scmp.ne.s32.totalorder %s152, %s155
      %p161 = scmp.eq.s32.totalorder %s27, 0
      %p162 = por %p160, %p161
      %p163 = scmp.ne.s32.totalorder %s152, %s155
      %p164 = scmp.eq.s32.totalorder %s32, 2
      %p165 = por %p163, %p164
      %p166 = scmp.ne.s32.totalorder %s155, %s156
      %p167 = scmp.eq.s32.totalorder %s32, 0
      %p168 = por %p166, %p167
      %p169 = scmp.ne.s32.totalorder %s155, %s156
      %p170 = scmp.eq.s32.totalorder %s33, 2
      %p171 = por %p169, %p170
      %p173 = scmp.ne.s32.totalorder %s156, %s172
      %p174 = scmp.eq.s32.totalorder %s33, 0
      %p175 = por %p173, %p174
      %s176 = ssub.s32 %s27, %s34
      %p177 = scmp.eq.s32.totalorder %s176, 0
      %s179 = sadd.s32 %s178, 1
      %s180 = scalar_select %p177, %s178, %s179
      %p183 = pneg %p177
      %p184 = scmp.eq.s32.totalorder %s27, 2
      %p185 = por %p183, %p184
      %p186 = scmp.ne.s32.totalorder %s178, %s181
      %p187 = scmp.eq.s32.totalorder %s27, 0
      %p188 = por %p186, %p187
      %p189 = scmp.ne.s32.totalorder %s178, %s181
      %p190 = scmp.eq.s32.totalorder %s32, 2
      %p191 = por %p189, %p190
      %p192 = scmp.ne.s32.totalorder %s181, %s182
      %p193 = scmp.eq.s32.totalorder %s32, 0
      %p194 = por %p192, %p193
      %p195 = scmp.ne.s32.totalorder %s181, %s182
      %p196 = scmp.eq.s32.totalorder %s33, 2
      %p197 = por %p195, %p196
      %p199 = scmp.ne.s32.totalorder %s182, %s198
      %p200 = scmp.eq.s32.totalorder %s33, 0
      %p201 = por %p199, %p200
      %s203 = sadd.s32 %s202, 1
      %p206 = scmp.eq.s32.totalorder %s27, 2
      %p207 = scmp.ne.s32.totalorder %s202, %s204
      %p208 = scmp.eq.s32.totalorder %s27, 0
      %p209 = por %p207, %p208
      %p210 = scmp.ne.s32.totalorder %s202, %s204
      %p211 = scmp.eq.s32.totalorder %s32, 2
      %p212 = por %p210, %p211
      %p213 = scmp.ne.s32.totalorder %s204, %s205
      %p214 = scmp.eq.s32.totalorder %s32, 0
      %p215 = por %p213, %p214
      %p216 = scmp.ne.s32.totalorder %s204, %s205
      %p217 = scmp.eq.s32.totalorder %s33, 2
      %p218 = por %p216, %p217
      %p220 = scmp.ne.s32.totalorder %s205, %s219
      %p221 = scmp.eq.s32.totalorder %s33, 0
      %p222 = por %p220, %p221
      %s224 = sadd.s32 %s223, 1
      %p227 = scmp.eq.s32.totalorder %s27, 2
      %p228 = scmp.ne.s32.totalorder %s223, %s225
      %p229 = scmp.eq.s32.totalorder %s27, 0
      %p230 = por %p228, %p229
      %p231 = scmp.ne.s32.totalorder %s223, %s225
      %p232 = scmp.eq.s32.totalorder %s32, 2
      %p233 = por %p231, %p232
      %p234 = scmp.ne.s32.totalorder %s225, %s226
      %p235 = scmp.eq.s32.totalorder %s32, 0
      %p236 = por %p234, %p235
      %p237 = scmp.ne.s32.totalorder %s225, %s226
      %p238 = scmp.eq.s32.totalorder %s33, 2
      %p239 = por %p237, %p238
      %p241 = scmp.ne.s32.totalorder %s226, %s240
      %p242 = scmp.eq.s32.totalorder %s33, 0
      %p243 = por %p241, %p242
      %s245 = sadd.s32 %s244, 1
      %p248 = scmp.eq.s32.totalorder %s27, 2
      %p249 = scmp.ne.s32.totalorder %s244, %s246
      %p250 = scmp.eq.s32.totalorder %s27, 0
      %p251 = por %p249, %p250
      %p252 = scmp.ne.s32.totalorder %s244, %s246
      %p253 = scmp.eq.s32.totalorder %s32, 2
      %p254 = por %p252, %p253
      %p255 = scmp.ne.s32.totalorder %s246, %s247
      %p256 = scmp.eq.s32.totalorder %s32, 0
      %p257 = por %p255, %p256
      %p258 = scmp.ne.s32.totalorder %s246, %s247
      %p259 = scmp.eq.s32.totalorder %s33, 2
      %p260 = por %p258, %p259
      %p262 = scmp.ne.s32.totalorder %s247, %s261
      %p263 = scmp.eq.s32.totalorder %s33, 0
      %p264 = por %p262, %p263
      %s266 = sadd.s32 %s265, 1
      %p269 = scmp.eq.s32.totalorder %s27, 2
      %p270 = scmp.ne.s32.totalorder %s265, %s267
      %p271 = scmp.eq.s32.totalorder %s27, 0
      %p272 = por %p270, %p271
      %p273 = scmp.ne.s32.totalorder %s265, %s267
      %p274 = scmp.eq.s32.totalorder %s32, 2
      %p275 = por %p273, %p274
      %p276 = scmp.ne.s32.totalorder %s267, %s268
      %p277 = scmp.eq.s32.totalorder %s32, 0
      %p278 = por %p276, %p277
      %p279 = scmp.ne.s32.totalorder %s267, %s268
      %p280 = scmp.eq.s32.totalorder %s33, 2
      %p281 = por %p279, %p280
      %p283 = scmp.ne.s32.totalorder %s268, %s282
      %p284 = scmp.eq.s32.totalorder %s33, 0
      %p285 = por %p283, %p284
      %s287 = sadd.s32 %s286, 1
      %p290 = scmp.eq.s32.totalorder %s27, 2
      %p291 = scmp.ne.s32.totalorder %s286, %s288
      %p292 = scmp.eq.s32.totalorder %s27, 0
      %p293 = por %p291, %p292
      %p294 = scmp.ne.s32.totalorder %s286, %s288
      %p295 = scmp.eq.s32.totalorder %s32, 2
      %p296 = por %p294, %p295
      %p297 = scmp.ne.s32.totalorder %s288, %s289
      %p298 = scmp.eq.s32.totalorder %s32, 0
      %p299 = por %p297, %p298
      %p300 = scmp.ne.s32.totalorder %s288, %s289
      %p301 = scmp.eq.s32.totalorder %s33, 2
      %p302 = por %p300, %p301
      %p304 = scmp.ne.s32.totalorder %s289, %s303
      %p305 = scmp.eq.s32.totalorder %s33, 0
      %p306 = por %p304, %p305
      %p307 = scmp.le.s32.totalorder 1, %s27
      %p308 = scmp.lt.s32.totalorder %s27, 4
      %p309 = pnand %p307, %p308
      %p310 = pneg %p309
      // Predicated region
      $region9: #{tpu_custom_call.1} parent=5 // pred_check
        _
      $region10: #{tpu_custom_call.1} parent=5 // pred_check_branch
        %312 = sbr.rel (%p309) target = $region12
      $region11: #{tpu_custom_call.1} parent=5 // pred_region
        %s313 = ssub.s32 %s27, 1
        // Predicated region
        $region13: #{tpu_custom_call.1} parent=11 // pred_check
          %p314 = pneg %p48
        $region14: #{tpu_custom_call.1} parent=11 // pred_check_branch
          %316 = sbr.rel (%p314) target = $region16
        $region15: #{tpu_custom_call.1} parent=11 // pred_region
          %318 = vsyncadd [#allocation5], 0
          %s319 = sshll.u32 %s0, 4
          %s320 = int_to_ptr.hbm [resolvable:$true] %s319
          %s321 = sshll.u32 [#allocation4], 4
          %s322 = int_to_ptr.vmem [resolvable:$true] %s321
          %327 = dma.hbm_to_vmem [thread:$0]  %s320, 1024, %s322, [#allocation5], 64, 64, 4
        $region16: #{tpu_custom_call.1} parent=11 // pred_fallthru
          _
        // Predicated region
        $region17: #{tpu_custom_call.1} parent=11 // pred_check
          %p328 = pneg %p69
        $region18: #{tpu_custom_call.1} parent=11 // pred_check_branch
          %330 = sbr.rel (%p328) target = $region20
        $region19: #{tpu_custom_call.1} parent=11 // pred_region
          %332 = vsyncadd [#allocation8], 0
          %s333 = sshll.u32 %s1, 4
          %s334 = int_to_ptr.hbm [resolvable:$true] %s333
          %s335 = sshll.u32 [#allocation7], 4
          %s336 = int_to_ptr.vmem [resolvable:$true] %s335
          %341 = dma.hbm_to_vmem [thread:$0]  %s334, 2048, %s336, [#allocation8], 128, 128, 8
        $region20: #{tpu_custom_call.1} parent=11 // pred_fallthru
          _
        // Predicated region
        $region21: #{tpu_custom_call.1} parent=11 // pred_check
          %p342 = pneg %p90
        $region22: #{tpu_custom_call.1} parent=11 // pred_check_branch
          %344 = sbr.rel (%p342) target = $region24
        $region23: #{tpu_custom_call.1} parent=11 // pred_region
          %346 = vsyncadd [#allocation8], 0
          %s348 = sshll.u32 %s2, 4
          %s349 = int_to_ptr.hbm [resolvable:$true] %s348
          %s350 = sshll.u32 [#allocation9], 4
          %s351 = int_to_ptr.vmem [resolvable:$true] %s350
          %353 = dma.hbm_to_vmem [thread:$0]  %s349, 128, %s351, [#allocation8]
        $region24: #{tpu_custom_call.1} parent=11 // pred_fallthru
          _
        // Predicated region
        $region25: #{tpu_custom_call.1} parent=11 // pred_check
          %p354 = pneg %p215
        $region26: #{tpu_custom_call.1} parent=11 // pred_check_branch
          %356 = sbr.rel (%p354) target = $region28
        $region27: #{tpu_custom_call.1} parent=11 // pred_region
          %358 = vsyncadd [#allocation14], 0
          %s359 = sshll.u32 %s7, 4
          %s360 = int_to_ptr.hbm [resolvable:$true] %s359
          %s361 = sshll.u32 [#allocation15], 4
          %s362 = int_to_ptr.vmem [resolvable:$true] %s361
          %367 = dma.hbm_to_vmem [thread:$0]  %s360, 8192, %s362, [#allocation14], 128, 128, 8
        $region28: #{tpu_custom_call.1} parent=11 // pred_fallthru
          _
        // Predicated region
        $region29: #{tpu_custom_call.1} parent=11 // pred_check
          %p368 = pneg %p236
        $region30: #{tpu_custom_call.1} parent=11 // pred_check_branch
          %370 = sbr.rel (%p368) target = $region32
        $region31: #{tpu_custom_call.1} parent=11 // pred_region
          _
        $region32: #{tpu_custom_call.1} parent=11 // pred_fallthru
          _
        // Predicated region
        $region33: #{tpu_custom_call.1} parent=11 // pred_check
          %p371 = pneg %p257
        $region34: #{tpu_custom_call.1} parent=11 // pred_check_branch
          %373 = sbr.rel (%p371) target = $region36
        $region35: #{tpu_custom_call.1} parent=11 // pred_region
          %375 = vsyncadd [#allocation17], 0
          %s376 = sshll.u32 %s9, 4
          %s377 = int_to_ptr.hbm [resolvable:$true] %s376
          %s378 = sshll.u32 [#allocation16], 4
          %s379 = int_to_ptr.vmem [resolvable:$true] %s378
          %384 = dma.hbm_to_vmem [thread:$0]  %s377, 2048, %s379, [#allocation17], 128, 128, 8
        $region36: #{tpu_custom_call.1} parent=11 // pred_fallthru
          _
        // Predicated region
        $region37: #{tpu_custom_call.1} parent=11 // pred_check
          %p385 = pneg %p278
        $region38: #{tpu_custom_call.1} parent=11 // pred_check_branch
          %387 = sbr.rel (%p385) target = $region40
        $region39: #{tpu_custom_call.1} parent=11 // pred_region
          _
        $region40: #{tpu_custom_call.1} parent=11 // pred_fallthru
          _
      $region12: #{tpu_custom_call.1} parent=5 // pred_fallthru
        _
      %p388 = scmp.lt.s32.totalorder %s27, 3
      // Predicated region
      $region41: #{tpu_custom_call.1} parent=5 // pred_check
        %p389 = pneg %p388
      $region42: #{tpu_custom_call.1} parent=5 // pred_check_branch
        %391 = sbr.rel (%p389) target = $region44
      $region43: #{tpu_custom_call.1} parent=5 // pred_region
        // Predicated region
        $region45: #{tpu_custom_call.1} parent=43 // pred_check
          %p392 = pneg %p110
        $region46: #{tpu_custom_call.1} parent=43 // pred_check_branch
          %394 = sbr.rel (%p392) target = $region48
        $region47: #{tpu_custom_call.1} parent=43 // pred_region
          %s395 = sand.u32 %s27, 1
          %s396 = scalar_lea.sflag [#allocation11], %s395
          %s397 = sand.u32 %s100, 1
          %s398 = smul.addr %s397, 128
          %s399 = scalar_lea.vmem [#allocation10], %s398
          %401 = vsyncadd %s396, 0
          %s402 = smul.addr %s27, 16
          %s403 = smul.addr %s402, 8
          %s404 = scalar_lea.hbm %s3, %s403
          %s405 = sshll.u32 %s404, 4
          %s406 = int_to_ptr.hbm [resolvable:$true] %s405
          %s407 = sshll.u32 %s399, 4
          %s408 = int_to_ptr.vmem [resolvable:$true] %s407
          %413 = dma.hbm_to_vmem [thread:$0]  %s406, 2048, %s408, %s396, 128, 128, 8
        $region48: #{tpu_custom_call.1} parent=43 // pred_fallthru
          _
        // Predicated region
        $region49: #{tpu_custom_call.1} parent=43 // pred_check
          %p414 = pneg %p136
        $region50: #{tpu_custom_call.1} parent=43 // pred_check_branch
          %416 = sbr.rel (%p414) target = $region52
        $region51: #{tpu_custom_call.1} parent=43 // pred_region
          %p417 = scmp.lt.s32.totalorder %s27, 2
          %s418 = scalar_select %p417, %s27, 2
          %s419 = scalar_lea.vmem %s4, %s418
        $region52: #{tpu_custom_call.1} parent=43 // pred_fallthru
          _
        // Predicated region
        $region53: #{tpu_custom_call.1} parent=43 // pred_check
          %p420 = pneg %p162
        $region54: #{tpu_custom_call.1} parent=43 // pred_check_branch
          %422 = sbr.rel (%p420) target = $region56
        $region55: #{tpu_custom_call.1} parent=43 // pred_region
          %s423 = sand.u32 %s27, 1
          %s424 = scalar_lea.sflag [#allocation11], %s423
          %s425 = sand.u32 %s152, 1
          %s426 = smul.addr %s425, 128
          %s427 = scalar_lea.vmem [#allocation12], %s426
          %429 = vsyncadd %s424, 0
          %s430 = smul.addr %s27, 16
          %s431 = smul.addr %s430, 8
          %s432 = scalar_lea.hbm %s5, %s431
          %s433 = sshll.u32 %s432, 4
          %s434 = int_to_ptr.hbm [resolvable:$true] %s433
          %s435 = sshll.u32 %s427, 4
          %s436 = int_to_ptr.vmem [resolvable:$true] %s435
          %441 = dma.hbm_to_vmem [thread:$0]  %s434, 2048, %s436, %s424, 128, 128, 8
        $region56: #{tpu_custom_call.1} parent=43 // pred_fallthru
          _
        // Predicated region
        $region57: #{tpu_custom_call.1} parent=43 // pred_check
          %p442 = pneg %p188
        $region58: #{tpu_custom_call.1} parent=43 // pred_check_branch
          %444 = sbr.rel (%p442) target = $region60
        $region59: #{tpu_custom_call.1} parent=43 // pred_region
          %s445 = sand.u32 %s27, 1
          %s446 = scalar_lea.sflag [#allocation14], %s445
          %s447 = sand.u32 %s178, 1
          %s448 = scalar_lea.vmem [#allocation13], %s447
          %450 = vsyncadd %s446, 0
          %s451 = scalar_lea.hbm %s6, %s27
          %s453 = sshll.u32 %s451, 4
          %s454 = int_to_ptr.hbm [resolvable:$true] %s453
          %s455 = sshll.u32 %s448, 4
          %s456 = int_to_ptr.vmem [resolvable:$true] %s455
          %458 = dma.hbm_to_vmem [thread:$0]  %s454, 16, %s456, %s446
        $region60: #{tpu_custom_call.1} parent=43 // pred_fallthru
          _
      $region44: #{tpu_custom_call.1} parent=5 // pred_fallthru
        _
      %p459 = scmp.le.s32.totalorder 1, %s27
      %p460 = scmp.lt.s32.totalorder %s27, 4
      %p461 = pnand %p459, %p460
      %p462 = pneg %p461
      // Predicated region
      $region61: #{tpu_custom_call.1} parent=5 // pred_check
        _
      $region62: #{tpu_custom_call.1} parent=5 // pred_check_branch
        %464 = sbr.rel (%p461) target = $region64
      $region63: #{tpu_custom_call.1} parent=5 // pred_region
        %s465 = ssub.s32 %s27, 1
        // Predicated region
        $region65: #{tpu_custom_call.1} parent=63 // pred_check
          %p466 = pneg %p48
        $region66: #{tpu_custom_call.1} parent=63 // pred_check_branch
          %468 = sbr.rel (%p466) target = $region68
        $region67: #{tpu_custom_call.1} parent=63 // pred_region
          %470 = dma.done [#allocation5], 1024
        $region68: #{tpu_custom_call.1} parent=63 // pred_fallthru
          _
        // Predicated region
        $region69: #{tpu_custom_call.1} parent=63 // pred_check
          %p471 = pneg %p69
        $region70: #{tpu_custom_call.1} parent=63 // pred_check_branch
          %473 = sbr.rel (%p471) target = $region72
        $region71: #{tpu_custom_call.1} parent=63 // pred_region
          %475 = dma.done [#allocation8], 2048
        $region72: #{tpu_custom_call.1} parent=63 // pred_fallthru
          _
        // Predicated region
        $region73: #{tpu_custom_call.1} parent=63 // pred_check
          %p476 = pneg %p90
        $region74: #{tpu_custom_call.1} parent=63 // pred_check_branch
          %478 = sbr.rel (%p476) target = $region76
        $region75: #{tpu_custom_call.1} parent=63 // pred_region
          %480 = dma.done [#allocation8], 128
        $region76: #{tpu_custom_call.1} parent=63 // pred_fallthru
          _
        %s481 = sand.u32 %s32, 1
        %s482 = scalar_lea.sflag [#allocation11], %s481
        %s483 = sand.u32 %s103, 1
        %s484 = smul.addr %s483, 128
        %s485 = scalar_lea.vmem [#allocation10], %s484
        // Predicated region
        $region77: #{tpu_custom_call.1} parent=63 // pred_check
          %p486 = pneg %p116
        $region78: #{tpu_custom_call.1} parent=63 // pred_check_branch
          %488 = sbr.rel (%p486) target = $region80
        $region79: #{tpu_custom_call.1} parent=63 // pred_region
          %490 = dma.done %s482, 2048
        $region80: #{tpu_custom_call.1} parent=63 // pred_fallthru
          _
        %s491 = sand.u32 %s32, 1
        %s492 = scalar_lea.sflag [#allocation11], %s491
        %s493 = sand.u32 %s155, 1
        %s494 = smul.addr %s493, 128
        %s495 = scalar_lea.vmem [#allocation12], %s494
        // Predicated region
        $region81: #{tpu_custom_call.1} parent=63 // pred_check
          %p496 = pneg %p168
        $region82: #{tpu_custom_call.1} parent=63 // pred_check_branch
          %498 = sbr.rel (%p496) target = $region84
        $region83: #{tpu_custom_call.1} parent=63 // pred_region
          %500 = dma.done %s492, 2048
        $region84: #{tpu_custom_call.1} parent=63 // pred_fallthru
          _
        %s501 = sand.u32 %s32, 1
        %s502 = scalar_lea.sflag [#allocation14], %s501
        %s503 = sand.u32 %s181, 1
        %s504 = scalar_lea.vmem [#allocation13], %s503
        // Predicated region
        $region85: #{tpu_custom_call.1} parent=63 // pred_check
          %p505 = pneg %p194
        $region86: #{tpu_custom_call.1} parent=63 // pred_check_branch
          %507 = sbr.rel (%p505) target = $region88
        $region87: #{tpu_custom_call.1} parent=63 // pred_region
          %509 = dma.done %s502, 16
        $region88: #{tpu_custom_call.1} parent=63 // pred_fallthru
          _
        // Predicated region
        $region89: #{tpu_custom_call.1} parent=63 // pred_check
          %p510 = pneg %p215
        $region90: #{tpu_custom_call.1} parent=63 // pred_check_branch
          %512 = sbr.rel (%p510) target = $region92
        $region91: #{tpu_custom_call.1} parent=63 // pred_region
          %514 = dma.done [#allocation14], 8192
        $region92: #{tpu_custom_call.1} parent=63 // pred_fallthru
          _
        // Predicated region
        $region93: #{tpu_custom_call.1} parent=63 // pred_check
          %p515 = pneg %p257
        $region94: #{tpu_custom_call.1} parent=63 // pred_check_branch
          %517 = sbr.rel (%p515) target = $region96
        $region95: #{tpu_custom_call.1} parent=63 // pred_region
          %519 = dma.done [#allocation17], 2048
        $region96: #{tpu_custom_call.1} parent=63 // pred_fallthru
          _
        %p520 = pneg %p48
        %p521 = pneg %p45
        %p522 = pneg %p69
        %p523 = pneg %p66
        %p524 = pneg %p90
        %p525 = pneg %p87
        %s526 = sand.u32 %s32, 1
        %s527 = scalar_lea.sflag [#allocation11], %s526
        %s528 = sand.u32 %s103, 1
        %s529 = smul.addr %s528, 128
        %s530 = scalar_lea.vmem [#allocation10], %s529
        %p531 = pneg %p116
        %p532 = pneg %p113
        %p533 = scmp.lt.s32.totalorder %s32, 2
        %s534 = scalar_select %p533, %s32, 2
        %s535 = scalar_lea.vmem %s4, %s534
        %p536 = pneg %p142
        %p537 = pneg %p139
        %s538 = sand.u32 %s32, 1
        %s539 = scalar_lea.sflag [#allocation11], %s538
        %s540 = sand.u32 %s155, 1
        %s541 = smul.addr %s540, 128
        %s542 = scalar_lea.vmem [#allocation12], %s541
        %p543 = pneg %p168
        %p544 = pneg %p165
        %s545 = sand.u32 %s32, 1
        %s546 = scalar_lea.sflag [#allocation14], %s545
        %s547 = sand.u32 %s181, 1
        %s548 = scalar_lea.vmem [#allocation13], %s547
        %p549 = pneg %p194
        %p550 = pneg %p191
        %p551 = pneg %p215
        %p552 = pneg %p212
        %p553 = pneg %p236
        %p554 = pneg %p233
        %p555 = pneg %p257
        %p556 = pneg %p254
        %p557 = pneg %p278
        %p558 = pneg %p275
        %p559 = pneg %p299
        %p560 = pneg %p296
        %p561 = scmp.lt.s32.totalorder %s32, 2
        %s562 = scalar_select %p561, %s32, 2
        %s563 = scalar_lea.vmem %s4, %s562
        %p564 = scmp.eq.s32.totalorder %s32, 0
        // Predicated region
        $region97: #{tpu_custom_call.1} parent=63 // pred_check
          %p565 = pneg %p564
        $region98: #{tpu_custom_call.1} parent=63 // pred_check_branch
          %567 = sbr.rel (%p565) target = $region100
        $region99: #{tpu_custom_call.1} parent=63 // pred_region
          %v568 = vld [vmem:[#allocation7] sm:$0xff]
          %v569 = vld [vmem:[#allocation7 + $0x8] sm:$0xff]
          %v570 = vld [vmem:[#allocation7 + $0x10] sm:$0xff]
          %v571 = vld [vmem:[#allocation7 + $0x18] sm:$0xff]
          %v572 = vld [vmem:[#allocation7 + $0x20] sm:$0xff]
          %v573 = vld [vmem:[#allocation7 + $0x28] sm:$0xff]
          %v574 = vld [vmem:[#allocation7 + $0x30] sm:$0xff]
          %v575 = vld [vmem:[#allocation7 + $0x38] sm:$0xff]
          %v576 = vld [vmem:[#allocation7 + $0x40] sm:$0xff]
          %v577 = vld [vmem:[#allocation7 + $0x48] sm:$0xff]
          %v578 = vld [vmem:[#allocation7 + $0x50] sm:$0xff]
          %v579 = vld [vmem:[#allocation7 + $0x58] sm:$0xff]
          %v580 = vld [vmem:[#allocation7 + $0x60] sm:$0xff]
          %v581 = vld [vmem:[#allocation7 + $0x68] sm:$0xff]
          %v582 = vld [vmem:[#allocation7 + $0x70] sm:$0xff]
          %v583 = vld [vmem:[#allocation7 + $0x78] sm:$0xff]
          %584 = vst [vmem:[#allocation2] sm:$0xff] %v568
          %585 = vst [vmem:[#allocation2 + $0x8] sm:$0xff] %v569
          %586 = vst [vmem:[#allocation2 + $0x10] sm:$0xff] %v570
          %587 = vst [vmem:[#allocation2 + $0x18] sm:$0xff] %v571
          %588 = vst [vmem:[#allocation2 + $0x20] sm:$0xff] %v572
          %589 = vst [vmem:[#allocation2 + $0x28] sm:$0xff] %v573
          %590 = vst [vmem:[#allocation2 + $0x30] sm:$0xff] %v574
          %591 = vst [vmem:[#allocation2 + $0x38] sm:$0xff] %v575
          %592 = vst [vmem:[#allocation2 + $0x40] sm:$0xff] %v576
          %593 = vst [vmem:[#allocation2 + $0x48] sm:$0xff] %v577
          %594 = vst [vmem:[#allocation2 + $0x50] sm:$0xff] %v578
          %595 = vst [vmem:[#allocation2 + $0x58] sm:$0xff] %v579
          %596 = vst [vmem:[#allocation2 + $0x60] sm:$0xff] %v580
          %597 = vst [vmem:[#allocation2 + $0x68] sm:$0xff] %v581
          %598 = vst [vmem:[#allocation2 + $0x70] sm:$0xff] %v582
          %599 = vst [vmem:[#allocation2 + $0x78] sm:$0xff] %v583
          %v600 = vld [vmem:[#allocation9] sm:$0xff]
          %601 = vmatpush.msra.mxu0 %v583
          %602 = vmatpush.msra.mxu0 %v582
          %603 = vmatpush.msra.mxu0 %v581
          %604 = vmatpush.msra.mxu0 %v580
          %605 = vmatpush.msra.mxu0 %v579
          %606 = vmatpush.msra.mxu0 %v578
          %607 = vmatpush.msra.mxu0 %v577
          %608 = vmatpush.msra.mxu0 %v576
          %609 = vmatpush.msra.mxu0 %v575
          %610 = vmatpush.msra.mxu0 %v574
          %611 = vmatpush.msra.mxu0 %v573
          %612 = vmatpush.msra.mxu0 %v572
          %613 = vmatpush.msra.mxu0 %v571
          %614 = vmatpush.msra.mxu0 %v570
          %615 = vmatpush.msra.mxu0 %v569
          %616 = vmatpush.msra.mxu0 %v568
          %617 = vmatmul.f32.gmra.mxu0 %v600
          %v618 = vpop.f32.mrf.mxu0
          %v619 = vadd.f32 0.0, %v618
          %620 = vdwg.mxu0
          %v621 = vld [vmem:[#allocation15] sm:$0xff]
          %v622 = vld [vmem:[#allocation15 + $0x8] sm:$0xff]
          %v623 = vld [vmem:[#allocation15 + $0x10] sm:$0xff]
          %v624 = vld [vmem:[#allocation15 + $0x18] sm:$0xff]
          %v625 = vld [vmem:[#allocation15 + $0x20] sm:$0xff]
          %v626 = vld [vmem:[#allocation15 + $0x28] sm:$0xff]
          %v627 = vld [vmem:[#allocation15 + $0x30] sm:$0xff]
          %v628 = vld [vmem:[#allocation15 + $0x38] sm:$0xff]
          %v629 = vld [vmem:[#allocation15 + $0x40] sm:$0xff]
          %v630 = vld [vmem:[#allocation15 + $0x48] sm:$0xff]
          %v631 = vld [vmem:[#allocation15 + $0x50] sm:$0xff]
          %v632 = vld [vmem:[#allocation15 + $0x58] sm:$0xff]
          %v633 = vld [vmem:[#allocation15 + $0x60] sm:$0xff]
          %v634 = vld [vmem:[#allocation15 + $0x68] sm:$0xff]
          %v635 = vld [vmem:[#allocation15 + $0x70] sm:$0xff]
          %v636 = vld [vmem:[#allocation15 + $0x78] sm:$0xff]
          %637 = vmatpush.msra.mxu0 %v636
          %638 = vmatpush.msra.mxu0 %v635
          %639 = vmatpush.msra.mxu0 %v634
          %640 = vmatpush.msra.mxu0 %v633
          %641 = vmatpush.msra.mxu0 %v632
          %642 = vmatpush.msra.mxu0 %v631
          %643 = vmatpush.msra.mxu0 %v630
          %644 = vmatpush.msra.mxu0 %v629
          %645 = vmatpush.msra.mxu0 %v628
          %646 = vmatpush.msra.mxu0 %v627
          %647 = vmatpush.msra.mxu0 %v626
          %648 = vmatpush.msra.mxu0 %v625
          %649 = vmatpush.msra.mxu0 %v624
          %650 = vmatpush.msra.mxu0 %v623
          %651 = vmatpush.msra.mxu0 %v622
          %652 = vmatpush.msra.mxu0 %v621
          %653 = vmatmul.f32.gmra.mxu0 %v619
          %v654 = vpop.f32.mrf.mxu0
          %v655 = vadd.f32 0.0, %v654
          %656 = vdwg.mxu0
          %657 = vst [vmem:[#allocation3] sm:$0xff] %v655
        $region100: #{tpu_custom_call.1} parent=63 // pred_fallthru
          _
        %v658 = vld [vmem:[#allocation2] sm:$0xff]
        %v659 = vld [vmem:[#allocation2 + $0x8] sm:$0xff]
        %v660 = vld [vmem:[#allocation2 + $0x10] sm:$0xff]
        %v661 = vld [vmem:[#allocation2 + $0x18] sm:$0xff]
        %v662 = vld [vmem:[#allocation2 + $0x20] sm:$0xff]
        %v663 = vld [vmem:[#allocation2 + $0x28] sm:$0xff]
        %v664 = vld [vmem:[#allocation2 + $0x30] sm:$0xff]
        %v665 = vld [vmem:[#allocation2 + $0x38] sm:$0xff]
        %v666 = vld [vmem:[#allocation2 + $0x40] sm:$0xff]
        %v667 = vld [vmem:[#allocation2 + $0x48] sm:$0xff]
        %v668 = vld [vmem:[#allocation2 + $0x50] sm:$0xff]
        %v669 = vld [vmem:[#allocation2 + $0x58] sm:$0xff]
        %v670 = vld [vmem:[#allocation2 + $0x60] sm:$0xff]
        %v671 = vld [vmem:[#allocation2 + $0x68] sm:$0xff]
        %v672 = vld [vmem:[#allocation2 + $0x70] sm:$0xff]
        %v673 = vld [vmem:[#allocation2 + $0x78] sm:$0xff]
        %v674 = vld [vmem:[#allocation4] sm:$0xf]
        %v675 = vld [vmem:[#allocation4 + $0x4] sm:$0xf]
        %v676 = vld [vmem:[#allocation4 + $0x8] sm:$0xf]
        %v677 = vld [vmem:[#allocation4 + $0xc] sm:$0xf]
        %v678 = vld [vmem:[#allocation4 + $0x10] sm:$0xf]
        %v679 = vld [vmem:[#allocation4 + $0x14] sm:$0xf]
        %v680 = vld [vmem:[#allocation4 + $0x18] sm:$0xf]
        %v681 = vld [vmem:[#allocation4 + $0x1c] sm:$0xf]
        %v682 = vld [vmem:[#allocation4 + $0x20] sm:$0xf]
        %v683 = vld [vmem:[#allocation4 + $0x24] sm:$0xf]
        %v684 = vld [vmem:[#allocation4 + $0x28] sm:$0xf]
        %v685 = vld [vmem:[#allocation4 + $0x2c] sm:$0xf]
        %v686 = vld [vmem:[#allocation4 + $0x30] sm:$0xf]
        %v687 = vld [vmem:[#allocation4 + $0x34] sm:$0xf]
        %v688 = vld [vmem:[#allocation4 + $0x38] sm:$0xf]
        %v689 = vld [vmem:[#allocation4 + $0x3c] sm:$0xf]
        %v690 = vpack.c.bf16 %v659, %v658
        %v691 = vpack.c.bf16 %v661, %v660
        %v692 = vpack.c.bf16 %v663, %v662
        %v693 = vpack.c.bf16 %v665, %v664
        %v694 = vpack.c.bf16 %v667, %v666
        %v695 = vpack.c.bf16 %v669, %v668
        %v696 = vpack.c.bf16 %v671, %v670
        %v697 = vpack.c.bf16 %v673, %v672
        %v714 = vunpack.c.l.b16 %v674
        %v715 = vunpack.c.l.b16 %v675
        %v716 = vunpack.c.l.b16 %v676
        %v717 = vunpack.c.l.b16 %v677
        %v718 = vunpack.c.l.b16 %v678
        %v719 = vunpack.c.l.b16 %v679
        %v720 = vunpack.c.l.b16 %v680
        %v721 = vunpack.c.l.b16 %v681
        %v722 = vunpack.c.l.b16 %v682
        %v723 = vunpack.c.l.b16 %v683
        %v724 = vunpack.c.l.b16 %v684
        %v725 = vunpack.c.l.b16 %v685
        %v726 = vunpack.c.l.b16 %v686
        %v727 = vunpack.c.l.b16 %v687
        %v728 = vunpack.c.l.b16 %v688
        %v729 = vunpack.c.l.b16 %v689
        %v730 = vpack.c.b16 %v715, %v714
        %v731 = vpack.c.b16 %v717, %v716
        %v732 = vpack.c.b16 %v719, %v718
        %v733 = vpack.c.b16 %v721, %v720
        %v734 = vpack.c.b16 %v723, %v722
        %v735 = vpack.c.b16 %v725, %v724
        %v736 = vpack.c.b16 %v727, %v726
        %v737 = vpack.c.b16 %v729, %v728
        %746 = vmatpush.bf16.msra.mxu0 %v697
        %747 = vmatpush.bf16.msra.mxu0 %v696
        %748 = vmatpush.bf16.msra.mxu0 %v695
        %749 = vmatpush.bf16.msra.mxu0 %v694
        %750 = vmatpush.bf16.msra.mxu0 %v693
        %751 = vmatpush.bf16.msra.mxu0 %v692
        %752 = vmatpush.bf16.msra.mxu0 %v691
        %753 = vmatpush.bf16.msra.mxu0 %v690
        %754 = vmatmul.bf16.gmra.mxu0 %v730
        %v755 = vpop.f32.mrf.mxu0
        %v756 = vadd.f32 0.0, %v755
        %v757 = vpop.f32.mrf.mxu0
        %v758 = vadd.f32 0.0, %v757
        %759 = vmatmul.bf16.gmra.mxu0 %v731
        %v760 = vpop.f32.mrf.mxu0
        %v761 = vadd.f32 0.0, %v760
        %v762 = vpop.f32.mrf.mxu0
        %v763 = vadd.f32 0.0, %v762
        %764 = vmatmul.bf16.gmra.mxu0 %v732
        %v765 = vpop.f32.mrf.mxu0
        %v766 = vadd.f32 0.0, %v765
        %v767 = vpop.f32.mrf.mxu0
        %v768 = vadd.f32 0.0, %v767
        %769 = vmatmul.bf16.gmra.mxu0 %v733
        %v770 = vpop.f32.mrf.mxu0
        %v771 = vadd.f32 0.0, %v770
        %v772 = vpop.f32.mrf.mxu0
        %v773 = vadd.f32 0.0, %v772
        %774 = vmatmul.bf16.gmra.mxu0 %v734
        %v775 = vpop.f32.mrf.mxu0
        %v776 = vadd.f32 0.0, %v775
        %v777 = vpop.f32.mrf.mxu0
        %v778 = vadd.f32 0.0, %v777
        %779 = vmatmul.bf16.gmra.mxu0 %v735
        %v780 = vpop.f32.mrf.mxu0
        %v781 = vadd.f32 0.0, %v780
        %v782 = vpop.f32.mrf.mxu0
        %v783 = vadd.f32 0.0, %v782
        %784 = vmatmul.bf16.gmra.mxu0 %v736
        %v785 = vpop.f32.mrf.mxu0
        %v786 = vadd.f32 0.0, %v785
        %v787 = vpop.f32.mrf.mxu0
        %v788 = vadd.f32 0.0, %v787
        %789 = vmatmul.bf16.gmra.mxu0 %v737
        %v790 = vpop.f32.mrf.mxu0
        %v791 = vadd.f32 0.0, %v790
        %v792 = vpop.f32.mrf.mxu0
        %v793 = vadd.f32 0.0, %v792
        %794 = vdwg.mxu0
        %v795 = vadd.f32 %v658, %v756
        %v796 = vadd.f32 %v659, %v758
        %v797 = vadd.f32 %v660, %v761
        %v798 = vadd.f32 %v661, %v763
        %v799 = vadd.f32 %v662, %v766
        %v800 = vadd.f32 %v663, %v768
        %v801 = vadd.f32 %v664, %v771
        %v802 = vadd.f32 %v665, %v773
        %v803 = vadd.f32 %v666, %v776
        %v804 = vadd.f32 %v667, %v778
        %v805 = vadd.f32 %v668, %v781
        %v806 = vadd.f32 %v669, %v783
        %v807 = vadd.f32 %v670, %v786
        %v808 = vadd.f32 %v671, %v788
        %v809 = vadd.f32 %v672, %v791
        %v810 = vadd.f32 %v673, %v793
        %v811 = vld [vmem:[%s485] sm:$0xff]
        %v812 = vld [vmem:[%s485 + $0x8] sm:$0xff]
        %v813 = vld [vmem:[%s485 + $0x10] sm:$0xff]
        %v814 = vld [vmem:[%s485 + $0x18] sm:$0xff]
        %v815 = vld [vmem:[%s485 + $0x20] sm:$0xff]
        %v816 = vld [vmem:[%s485 + $0x28] sm:$0xff]
        %v817 = vld [vmem:[%s485 + $0x30] sm:$0xff]
        %v818 = vld [vmem:[%s485 + $0x38] sm:$0xff]
        %v819 = vld [vmem:[%s485 + $0x40] sm:$0xff]
        %v820 = vld [vmem:[%s485 + $0x48] sm:$0xff]
        %v821 = vld [vmem:[%s485 + $0x50] sm:$0xff]
        %v822 = vld [vmem:[%s485 + $0x58] sm:$0xff]
        %v823 = vld [vmem:[%s485 + $0x60] sm:$0xff]
        %v824 = vld [vmem:[%s485 + $0x68] sm:$0xff]
        %v825 = vld [vmem:[%s485 + $0x70] sm:$0xff]
        %v826 = vld [vmem:[%s485 + $0x78] sm:$0xff]
        %v827 = vld [vmem:[%s563] sm:$0x1]
        %v829 = vperm.slane %v827, 0
        %831 = vmatpush.msra.mxu0 %v826
        %832 = vmatpush.msra.mxu0 %v825
        %833 = vmatpush.msra.mxu0 %v824
        %834 = vmatpush.msra.mxu0 %v823
        %835 = vmatpush.msra.mxu0 %v822
        %836 = vmatpush.msra.mxu0 %v821
        %837 = vmatpush.msra.mxu0 %v820
        %838 = vmatpush.msra.mxu0 %v819
        %839 = vmatpush.msra.mxu0 %v818
        %840 = vmatpush.msra.mxu0 %v817
        %841 = vmatpush.msra.mxu0 %v816
        %842 = vmatpush.msra.mxu0 %v815
        %843 = vmatpush.msra.mxu0 %v814
        %844 = vmatpush.msra.mxu0 %v813
        %845 = vmatpush.msra.mxu0 %v812
        %846 = vmatpush.msra.mxu0 %v811
        %847 = vmatmul.f32.gmra.mxu0 %v795
        %v848 = vpop.f32.mrf.mxu0
        %v849 = vadd.f32 %v829, %v848
        %850 = vmatmul.f32.gmra.mxu0 %v796
        %v851 = vpop.f32.mrf.mxu0
        %v852 = vadd.f32 %v829, %v851
        %853 = vmatmul.f32.gmra.mxu0 %v797
        %v854 = vpop.f32.mrf.mxu0
        %v855 = vadd.f32 %v829, %v854
        %856 = vmatmul.f32.gmra.mxu0 %v798
        %v857 = vpop.f32.mrf.mxu0
        %v858 = vadd.f32 %v829, %v857
        %859 = vmatmul.f32.gmra.mxu0 %v799
        %v860 = vpop.f32.mrf.mxu0
        %v861 = vadd.f32 %v829, %v860
        %862 = vmatmul.f32.gmra.mxu0 %v800
        %v863 = vpop.f32.mrf.mxu0
        %v864 = vadd.f32 %v829, %v863
        %865 = vmatmul.f32.gmra.mxu0 %v801
        %v866 = vpop.f32.mrf.mxu0
        %v867 = vadd.f32 %v829, %v866
        %868 = vmatmul.f32.gmra.mxu0 %v802
        %v869 = vpop.f32.mrf.mxu0
        %v870 = vadd.f32 %v829, %v869
        %871 = vmatmul.f32.gmra.mxu0 %v803
        %v872 = vpop.f32.mrf.mxu0
        %v873 = vadd.f32 %v829, %v872
        %874 = vmatmul.f32.gmra.mxu0 %v804
        %v875 = vpop.f32.mrf.mxu0
        %v876 = vadd.f32 %v829, %v875
        %877 = vmatmul.f32.gmra.mxu0 %v805
        %v878 = vpop.f32.mrf.mxu0
        %v879 = vadd.f32 %v829, %v878
        %880 = vmatmul.f32.gmra.mxu0 %v806
        %v881 = vpop.f32.mrf.mxu0
        %v882 = vadd.f32 %v829, %v881
        %883 = vmatmul.f32.gmra.mxu0 %v807
        %v884 = vpop.f32.mrf.mxu0
        %v885 = vadd.f32 %v829, %v884
        %886 = vmatmul.f32.gmra.mxu0 %v808
        %v887 = vpop.f32.mrf.mxu0
        %v888 = vadd.f32 %v829, %v887
        %889 = vmatmul.f32.gmra.mxu0 %v809
        %v890 = vpop.f32.mrf.mxu0
        %v891 = vadd.f32 %v829, %v890
        %892 = vmatmul.f32.gmra.mxu0 %v810
        %v893 = vpop.f32.mrf.mxu0
        %v894 = vadd.f32 %v829, %v893
        %895 = vdwg.mxu0
        %v896 = vmax.f32 %v849, 0.0
        %v897 = vmax.f32 %v852, 0.0
        %v898 = vmax.f32 %v855, 0.0
        %v899 = vmax.f32 %v858, 0.0
        %v900 = vmax.f32 %v861, 0.0
        %v901 = vmax.f32 %v864, 0.0
        %v902 = vmax.f32 %v867, 0.0
        %v903 = vmax.f32 %v870, 0.0
        %v904 = vmax.f32 %v873, 0.0
        %v905 = vmax.f32 %v876, 0.0
        %v906 = vmax.f32 %v879, 0.0
        %v907 = vmax.f32 %v882, 0.0
        %v908 = vmax.f32 %v885, 0.0
        %v909 = vmax.f32 %v888, 0.0
        %v910 = vmax.f32 %v891, 0.0
        %v911 = vmax.f32 %v894, 0.0
        %v912 = vld [vmem:[%s495] sm:$0xff]
        %v913 = vld [vmem:[%s495 + $0x8] sm:$0xff]
        %v914 = vld [vmem:[%s495 + $0x10] sm:$0xff]
        %v915 = vld [vmem:[%s495 + $0x18] sm:$0xff]
        %v916 = vld [vmem:[%s495 + $0x20] sm:$0xff]
        %v917 = vld [vmem:[%s495 + $0x28] sm:$0xff]
        %v918 = vld [vmem:[%s495 + $0x30] sm:$0xff]
        %v919 = vld [vmem:[%s495 + $0x38] sm:$0xff]
        %v920 = vld [vmem:[%s495 + $0x40] sm:$0xff]
        %v921 = vld [vmem:[%s495 + $0x48] sm:$0xff]
        %v922 = vld [vmem:[%s495 + $0x50] sm:$0xff]
        %v923 = vld [vmem:[%s495 + $0x58] sm:$0xff]
        %v924 = vld [vmem:[%s495 + $0x60] sm:$0xff]
        %v925 = vld [vmem:[%s495 + $0x68] sm:$0xff]
        %v926 = vld [vmem:[%s495 + $0x70] sm:$0xff]
        %v927 = vld [vmem:[%s495 + $0x78] sm:$0xff]
        %v928 = vld [vmem:[%s504] sm:$0x1]
        %v930 = vperm.slane %v928, 0
        %932 = vmatpush.msra.mxu0 %v927
        %933 = vmatpush.msra.mxu0 %v926
        %934 = vmatpush.msra.mxu0 %v925
        %935 = vmatpush.msra.mxu0 %v924
        %936 = vmatpush.msra.mxu0 %v923
        %937 = vmatpush.msra.mxu0 %v922
        %938 = vmatpush.msra.mxu0 %v921
        %939 = vmatpush.msra.mxu0 %v920
        %940 = vmatpush.msra.mxu0 %v919
        %941 = vmatpush.msra.mxu0 %v918
        %942 = vmatpush.msra.mxu0 %v917
        %943 = vmatpush.msra.mxu0 %v916
        %944 = vmatpush.msra.mxu0 %v915
        %945 = vmatpush.msra.mxu0 %v914
        %946 = vmatpush.msra.mxu0 %v913
        %947 = vmatpush.msra.mxu0 %v912
        %948 = vmatmul.f32.gmra.mxu0 %v896
        %v949 = vpop.f32.mrf.mxu0
        %v950 = vadd.f32 %v930, %v949
        %951 = vmatmul.f32.gmra.mxu0 %v897
        %v952 = vpop.f32.mrf.mxu0
        %v953 = vadd.f32 %v930, %v952
        %954 = vmatmul.f32.gmra.mxu0 %v898
        %v955 = vpop.f32.mrf.mxu0
        %v956 = vadd.f32 %v930, %v955
        %957 = vmatmul.f32.gmra.mxu0 %v899
        %v958 = vpop.f32.mrf.mxu0
        %v959 = vadd.f32 %v930, %v958
        %960 = vmatmul.f32.gmra.mxu0 %v900
        %v961 = vpop.f32.mrf.mxu0
        %v962 = vadd.f32 %v930, %v961
        %963 = vmatmul.f32.gmra.mxu0 %v901
        %v964 = vpop.f32.mrf.mxu0
        %v965 = vadd.f32 %v930, %v964
        %966 = vmatmul.f32.gmra.mxu0 %v902
        %v967 = vpop.f32.mrf.mxu0
        %v968 = vadd.f32 %v930, %v967
        %969 = vmatmul.f32.gmra.mxu0 %v903
        %v970 = vpop.f32.mrf.mxu0
        %v971 = vadd.f32 %v930, %v970
        %972 = vmatmul.f32.gmra.mxu0 %v904
        %v973 = vpop.f32.mrf.mxu0
        %v974 = vadd.f32 %v930, %v973
        %975 = vmatmul.f32.gmra.mxu0 %v905
        %v976 = vpop.f32.mrf.mxu0
        %v977 = vadd.f32 %v930, %v976
        %978 = vmatmul.f32.gmra.mxu0 %v906
        %v979 = vpop.f32.mrf.mxu0
        %v980 = vadd.f32 %v930, %v979
        %981 = vmatmul.f32.gmra.mxu0 %v907
        %v982 = vpop.f32.mrf.mxu0
        %v983 = vadd.f32 %v930, %v982
        %984 = vmatmul.f32.gmra.mxu0 %v908
        %v985 = vpop.f32.mrf.mxu0
        %v986 = vadd.f32 %v930, %v985
        %987 = vmatmul.f32.gmra.mxu0 %v909
        %v988 = vpop.f32.mrf.mxu0
        %v989 = vadd.f32 %v930, %v988
        %990 = vmatmul.f32.gmra.mxu0 %v910
        %v991 = vpop.f32.mrf.mxu0
        %v992 = vadd.f32 %v930, %v991
        %993 = vmatmul.f32.gmra.mxu0 %v911
        %v994 = vpop.f32.mrf.mxu0
        %v995 = vadd.f32 %v930, %v994
        %996 = vdwg.mxu0
        %997 = vst [vmem:[#allocation2] sm:$0xff] %v950
        %998 = vst [vmem:[#allocation2 + $0x8] sm:$0xff] %v953
        %999 = vst [vmem:[#allocation2 + $0x10] sm:$0xff] %v956
        %1000 = vst [vmem:[#allocation2 + $0x18] sm:$0xff] %v959
        %1001 = vst [vmem:[#allocation2 + $0x20] sm:$0xff] %v962
        %1002 = vst [vmem:[#allocation2 + $0x28] sm:$0xff] %v965
        %1003 = vst [vmem:[#allocation2 + $0x30] sm:$0xff] %v968
        %1004 = vst [vmem:[#allocation2 + $0x38] sm:$0xff] %v971
        %1005 = vst [vmem:[#allocation2 + $0x40] sm:$0xff] %v974
        %1006 = vst [vmem:[#allocation2 + $0x48] sm:$0xff] %v977
        %1007 = vst [vmem:[#allocation2 + $0x50] sm:$0xff] %v980
        %1008 = vst [vmem:[#allocation2 + $0x58] sm:$0xff] %v983
        %1009 = vst [vmem:[#allocation2 + $0x60] sm:$0xff] %v986
        %1010 = vst [vmem:[#allocation2 + $0x68] sm:$0xff] %v989
        %1011 = vst [vmem:[#allocation2 + $0x70] sm:$0xff] %v992
        %1012 = vst [vmem:[#allocation2 + $0x78] sm:$0xff] %v995
        %v1013 = vld [vmem:[#allocation9] sm:$0xff]
        %1014 = vmatpush.msra.mxu0 %v995
        %1015 = vmatpush.msra.mxu0 %v992
        %1016 = vmatpush.msra.mxu0 %v989
        %1017 = vmatpush.msra.mxu0 %v986
        %1018 = vmatpush.msra.mxu0 %v983
        %1019 = vmatpush.msra.mxu0 %v980
        %1020 = vmatpush.msra.mxu0 %v977
        %1021 = vmatpush.msra.mxu0 %v974
        %1022 = vmatpush.msra.mxu0 %v971
        %1023 = vmatpush.msra.mxu0 %v968
        %1024 = vmatpush.msra.mxu0 %v965
        %1025 = vmatpush.msra.mxu0 %v962
        %1026 = vmatpush.msra.mxu0 %v959
        %1027 = vmatpush.msra.mxu0 %v956
        %1028 = vmatpush.msra.mxu0 %v953
        %1029 = vmatpush.msra.mxu0 %v950
        %1030 = vmatmul.f32.gmra.mxu0 %v1013
        %v1031 = vpop.f32.mrf.mxu0
        %v1032 = vadd.f32 0.0, %v1031
        %1033 = vdwg.mxu0
        %v1034 = vld [vmem:[#allocation3] sm:$0xff]
        %s1035 = sadd.s32 %s32, 1
        %s1036 = smul.u32 %s1035, 128
        %s1037 = scalar_lea.vmem [#allocation15], %s1036
        %v1038 = vld [vmem:[%s1037] sm:$0xff]
        %v1039 = vld [vmem:[%s1037 + $0x8] sm:$0xff]
        %v1040 = vld [vmem:[%s1037 + $0x10] sm:$0xff]
        %v1041 = vld [vmem:[%s1037 + $0x18] sm:$0xff]
        %v1042 = vld [vmem:[%s1037 + $0x20] sm:$0xff]
        %v1043 = vld [vmem:[%s1037 + $0x28] sm:$0xff]
        %v1044 = vld [vmem:[%s1037 + $0x30] sm:$0xff]
        %v1045 = vld [vmem:[%s1037 + $0x38] sm:$0xff]
        %v1046 = vld [vmem:[%s1037 + $0x40] sm:$0xff]
        %v1047 = vld [vmem:[%s1037 + $0x48] sm:$0xff]
        %v1048 = vld [vmem:[%s1037 + $0x50] sm:$0xff]
        %v1049 = vld [vmem:[%s1037 + $0x58] sm:$0xff]
        %v1050 = vld [vmem:[%s1037 + $0x60] sm:$0xff]
        %v1051 = vld [vmem:[%s1037 + $0x68] sm:$0xff]
        %v1052 = vld [vmem:[%s1037 + $0x70] sm:$0xff]
        %v1053 = vld [vmem:[%s1037 + $0x78] sm:$0xff]
        %1054 = vmatpush.msra.mxu0 %v1053
        %1055 = vmatpush.msra.mxu0 %v1052
        %1056 = vmatpush.msra.mxu0 %v1051
        %1057 = vmatpush.msra.mxu0 %v1050
        %1058 = vmatpush.msra.mxu0 %v1049
        %1059 = vmatpush.msra.mxu0 %v1048
        %1060 = vmatpush.msra.mxu0 %v1047
        %1061 = vmatpush.msra.mxu0 %v1046
        %1062 = vmatpush.msra.mxu0 %v1045
        %1063 = vmatpush.msra.mxu0 %v1044
        %1064 = vmatpush.msra.mxu0 %v1043
        %1065 = vmatpush.msra.mxu0 %v1042
        %1066 = vmatpush.msra.mxu0 %v1041
        %1067 = vmatpush.msra.mxu0 %v1040
        %1068 = vmatpush.msra.mxu0 %v1039
        %1069 = vmatpush.msra.mxu0 %v1038
        %1070 = vmatmul.f32.gmra.mxu0 %v1032
        %v1071 = vpop.f32.mrf.mxu0
        %v1072 = vadd.f32 0.0, %v1071
        %1073 = vdwg.mxu0
        %v1074 = vadd.f32 %v1034, %v1072
        %1075 = vst [vmem:[#allocation3] sm:$0xff] %v1074
        %p1076 = scmp.eq.s32.totalorder %s32, 2
        // Predicated region
        $region101: #{tpu_custom_call.1} parent=63 // pred_check
          %p1077 = pneg %p1076
        $region102: #{tpu_custom_call.1} parent=63 // pred_check_branch
          %1079 = sbr.rel (%p1077) target = $region104
        $region103: #{tpu_custom_call.1} parent=63 // pred_region
          %v1080 = vld [vmem:[#allocation3] sm:$0xff]
          %v1081 = vld [vmem:[%s8] sm:$0x1]
          %v1083 = vperm.slane %v1081, 0
          %v1085 = vadd.f32 %v1080, %v1083
          %v1086 = vmax.f32 %v1085, 0.0
          %v1087 = vld [vmem:[#allocation16] sm:$0xff]
          %v1088 = vld [vmem:[#allocation16 + $0x8] sm:$0xff]
          %v1089 = vld [vmem:[#allocation16 + $0x10] sm:$0xff]
          %v1090 = vld [vmem:[#allocation16 + $0x18] sm:$0xff]
          %v1091 = vld [vmem:[#allocation16 + $0x20] sm:$0xff]
          %v1092 = vld [vmem:[#allocation16 + $0x28] sm:$0xff]
          %v1093 = vld [vmem:[#allocation16 + $0x30] sm:$0xff]
          %v1094 = vld [vmem:[#allocation16 + $0x38] sm:$0xff]
          %v1095 = vld [vmem:[#allocation16 + $0x40] sm:$0xff]
          %v1096 = vld [vmem:[#allocation16 + $0x48] sm:$0xff]
          %v1097 = vld [vmem:[#allocation16 + $0x50] sm:$0xff]
          %v1098 = vld [vmem:[#allocation16 + $0x58] sm:$0xff]
          %v1099 = vld [vmem:[#allocation16 + $0x60] sm:$0xff]
          %v1100 = vld [vmem:[#allocation16 + $0x68] sm:$0xff]
          %v1101 = vld [vmem:[#allocation16 + $0x70] sm:$0xff]
          %v1102 = vld [vmem:[#allocation16 + $0x78] sm:$0xff]
          %v1103 = vld [vmem:[%s10] sm:$0x1]
          %v1105 = vperm.slane %v1103, 0
          %1107 = vmatpush.msra.mxu0 %v1102
          %1108 = vmatpush.msra.mxu0 %v1101
          %1109 = vmatpush.msra.mxu0 %v1100
          %1110 = vmatpush.msra.mxu0 %v1099
          %1111 = vmatpush.msra.mxu0 %v1098
          %1112 = vmatpush.msra.mxu0 %v1097
          %1113 = vmatpush.msra.mxu0 %v1096
          %1114 = vmatpush.msra.mxu0 %v1095
          %1115 = vmatpush.msra.mxu0 %v1094
          %1116 = vmatpush.msra.mxu0 %v1093
          %1117 = vmatpush.msra.mxu0 %v1092
          %1118 = vmatpush.msra.mxu0 %v1091
          %1119 = vmatpush.msra.mxu0 %v1090
          %1120 = vmatpush.msra.mxu0 %v1089
          %1121 = vmatpush.msra.mxu0 %v1088
          %1122 = vmatpush.msra.mxu0 %v1087
          %1123 = vmatmul.f32.gmra.mxu0 %v1086
          %v1124 = vpop.f32.mrf.mxu0
          %v1125 = vadd.f32 %v1105, %v1124
          %1126 = vdwg.mxu0
          %1127 = vst [vmem:[#allocation18] sm:$0xff] %v1125
        $region104: #{tpu_custom_call.1} parent=63 // pred_fallthru
          _
        // Predicated region
        $region105: #{tpu_custom_call.1} parent=63 // pred_check
          %p1128 = pneg %p296
        $region106: #{tpu_custom_call.1} parent=63 // pred_check_branch
          %1130 = sbr.rel (%p1128) target = $region108
        $region107: #{tpu_custom_call.1} parent=63 // pred_region
          %1132 = vsyncadd [#allocation6], 0
          %s1134 = sshll.u32 [#allocation18], 4
          %s1135 = int_to_ptr.vmem [resolvable:$true] %s1134
          %s1136 = sshll.u32 %s11, 4
          %s1137 = int_to_ptr.hbm [resolvable:$true] %s1136
          %1139 = dma.vmem_to_hbm [thread:$0]  %s1135, 128, %s1137, [#allocation6]
        $region108: #{tpu_custom_call.1} parent=63 // pred_fallthru
          _
        // Predicated region
        $region109: #{tpu_custom_call.1} parent=63 // pred_check
          %p1140 = pneg %p296
        $region110: #{tpu_custom_call.1} parent=63 // pred_check_branch
          %1142 = sbr.rel (%p1140) target = $region112
        $region111: #{tpu_custom_call.1} parent=63 // pred_region
          %1144 = dma.done [#allocation6], 128
        $region112: #{tpu_custom_call.1} parent=63 // pred_fallthru
          _
      $region64: #{tpu_custom_call.1} parent=5 // pred_fallthru
        _
      %p1145 = scmp.le.s32.totalorder 2, %s27
      // Predicated region
      $region113: #{tpu_custom_call.1} parent=5 // pred_check
        %p1146 = pneg %p1145
      $region114: #{tpu_custom_call.1} parent=5 // pred_check_branch
        %1148 = sbr.rel (%p1146) target = $region116
      $region115: #{tpu_custom_call.1} parent=5 // pred_region
        %s1149 = ssub.s32 %s27, 2
      $region116: #{tpu_custom_call.1} parent=5 // pred_fallthru
        _
    $region6: #{tpu_custom_call.1} parent=1 // loop_footer
      %s31 = sadd.s32 1, %s27
    $region7: #{tpu_custom_call.1} parent=1 // loop_footer_branch
      %26 = sbr.rel target = $region3
    $region8: #{tpu_custom_call.1} parent=1 // loop_exit
      _
    %1150 = vsyncpa [#allocation5], 1
    %s1151 = scalar_lea.sflag [#allocation5], 1
    %1152 = vsyncpa %s1151, 1
    %1153 = vsyncpa [#allocation8], 1
    %1154 = vsyncpa [#allocation11], 1
    %s1155 = scalar_lea.sflag [#allocation11], 1
    %1156 = vsyncpa %s1155, 1
    %1157 = vsyncpa [#allocation14], 1
    %s1158 = scalar_lea.sflag [#allocation14], 1
    %1159 = vsyncpa %s1158, 1
    %1160 = vsyncpa [#allocation17], 1
    %1161 = vsyncpa [#allocation6], 1
    %s1162 = scalar_lea.sflag [#allocation6], 1
    %1163 = vsyncpa %s1162, 1

</llo_original>
